<compile_context>
chip_gen: v6e
topology: v6e:2x2x1
jax: 0.10.0
libtpu: 0.0.40
codegen_flags: <defaults>
</compile_context>

<pallas_src>
from typing import NamedTuple

import jax
import jax.numpy as jnp
from jax.experimental import pallas as pl
from jax.experimental.pallas import tpu as pltpu


def _round_up(v: int, m: int) -> int:
    return ((v + m - 1) // m) * m


def _vmem_capacity_bytes() -> int:
    """Physical VMEM per TensorCore; conservative (v7x) fallback if unknown."""
    try:
        return int(pltpu.get_tpu_info().vmem_capacity_bytes)
    except Exception:
        return 64 << 20


class ClassifierParams(NamedTuple):
    """One-time prepared parameters (do NOT rebuild per forward call)."""
    w: jax.Array          # [unit_size, N_pad]  transposed, lane-padded, maybe bf16
    b: jax.Array          # [1, N_pad] float32  lane-padded
    num_classes: int      # true number of classes (<= N_pad)


def prepare_classifier_params(weight, bias, *, compute_dtype=None, lane_pad=True):
    """Hoisted parameter prep (runs once, not per forward).

    weight : [num_classes, unit_size]  (PyTorch nn.Linear layout)
    bias   : [num_classes]
    compute_dtype : e.g. jnp.bfloat16 halves weight HBM/VMEM bytes and uses the
        native bf16 MXU path (valid on v5e/v6e/v7x); accumulation stays f32.
    """
    num_classes, _ = weight.shape
    w = weight.T                                            # [K, N]
    if compute_dtype is not None:
        w = w.astype(compute_dtype)
    b = bias
    n_pad = _round_up(num_classes, 128) if lane_pad else num_classes
    if n_pad != num_classes:
        # Zero columns contribute nothing; output stores become unmasked,
        # lane-dense vst.
        w = jnp.pad(w, ((0, 0), (0, n_pad - num_classes)))
        b = jnp.pad(b, (0, n_pad - num_classes))
    b = b.reshape(1, n_pad).astype(jnp.float32)
    return ClassifierParams(w=w, b=b, num_classes=int(num_classes))


def _linear_bias_kernel(x_ref, w_ref, b_ref, o_ref):
    """Single-shot fused linear: o = x @ w + b, f32 accumulation on the MXU."""
    x = x_ref[...]
    w = w_ref[...]
    if x.dtype != w.dtype:
        # In-kernel cast after the VMEM load: no extra HBM pass on x.
        x = x.astype(w.dtype)
    acc = jnp.dot(x, w, preferred_element_type=jnp.float32)
    o_ref[...] = (acc + b_ref[...]).astype(o_ref.dtype)


def _pallas_linear(x, w, b, *, tm, grid_m, out_dtype, vmem_limit, cost,
                   single_buffer_params):
    m, k = x.shape
    _, n_pad = w.shape
    param_kw = {}
    if single_buffer_params:
        # Constant index_map => the tile never changes; one buffer is enough.
        param_kw = dict(pipeline_mode=pl.Buffered(1))
    return pl.pallas_call(
        _linear_bias_kernel,
        out_shape=jax.ShapeDtypeStruct((m, n_pad), out_dtype),
        grid_spec=pltpu.PrefetchScalarGridSpec(
            num_scalar_prefetch=0,
            grid=(grid_m,),
            in_specs=[
                pl.BlockSpec((tm, k), lambda i: (i, 0)),                 # x rows
                pl.BlockSpec((k, n_pad), lambda i: (0, 0), **param_kw),  # weights
                pl.BlockSpec((1, n_pad), lambda i: (0, 0), **param_kw),  # bias
            ],
            out_specs=pl.BlockSpec((tm, n_pad), lambda i: (i, 0)),
        ),
        compiler_params=pltpu.CompilerParams(
            dimension_semantics=("parallel",),   # independent row tiles (megacore)
            vmem_limit_bytes=vmem_limit,
        ),
        cost_estimate=cost,
    )(x, w, b)


def res_classifier_forward(x, params: ClassifierParams, *, reverse=False,
                           lambd=1.0, block_m=2048, out_dtype=jnp.float32,
                           slice_output=True, min_pallas_rows=64):
    """ResClassifier.forward.  `reverse` / `lambd` only affect the backward
    pass of the original module (gradient reversal) and are forward no-ops."""
    # TODO(synk): gradient reversal (grad * -lambd when reverse=True) needs a
    # jax.custom_vjp around this call for the training path; forward is identity.
    del reverse, lambd

    w, b, num_classes = params
    lead = x.shape[:-1]
    if x.ndim != 2:
        x = x.reshape(-1, x.shape[-1])
    m, k = x.shape
    kw_, n_pad = w.shape
    assert k == kw_, "input feature dim does not match unit_size"

    x_item = x.dtype.itemsize
    w_item = w.dtype.itemsize
    out_item = jnp.dtype(out_dtype).itemsize

    if m < min_pallas_rows:
        # Tiny batches are dominated by fixed launch/DMA overhead; XLA's fused
        # dot is at least as good there.
        acc = jnp.dot(x.astype(w.dtype), w, preferred_element_type=jnp.float32)
        out = (acc + b).astype(out_dtype)
    else:
        # --- generation-aware tile sizing ------------------------------------
        cap = _vmem_capacity_bytes()
        budget = int(cap * 0.45)                         # leave compiler headroom
        fixed = 2 * (k * n_pad * w_item + n_pad * 4)     # params, worst case 2 bufs
        per_row = 2 * k * x_item + 2 * n_pad * out_item  # x + out, double-buffered
        tm_cap = max(8, (budget - fixed) // per_row)
        tm = min(block_m, m, tm_cap)
        if tm >= m and m >= 16:
            # Would be a single grid step: split so both v7x TCs get a row tile.
            tm = _round_up(pl.cdiv(m, 2), 8)
        if tm < m:
            tm = max(8, (tm // 8) * 8)                   # sublane-aligned tiles
        else:
            tm = m                                       # full extent always legal
        grid_m = pl.cdiv(m, tm)

        used = 2 * tm * k * x_item + fixed + 2 * tm * n_pad * out_item
        vmem_limit = max(16 << 20, min(int(cap * 0.9), used + (4 << 20)))

        cost = pl.CostEstimate(
            flops=2 * m * k * n_pad,
            transcendentals=0,
            bytes_accessed=(m * k * x_item + k * n_pad * w_item
                            + n_pad * 4 + m * n_pad * out_item),
        )
        try:
            out = _pallas_linear(x, w, b, tm=tm, grid_m=grid_m,
                                 out_dtype=out_dtype, vmem_limit=vmem_limit,
                                 cost=cost, single_buffer_params=True)
        except Exception:
            # pl.Buffered(1) unsupported on this JAX version; the VMEM budget
            # already assumed double-buffered params, so plain specs are safe.
            out = _pallas_linear(x, w, b, tm=tm, grid_m=grid_m,
                                 out_dtype=out_dtype, vmem_limit=vmem_limit,
                                 cost=cost, single_buffer_params=False)

    if slice_output and n_pad != num_classes:
        # Exact module semantics.  Pass slice_output=False (and ignore columns
        # >= num_classes downstream) to skip this extra (M, N_pad) HBM pass.
        out = out[:, :num_classes]
    if len(lead) != 1:
        out = out.reshape(*lead, out.shape[-1])
    return out


if __name__ == "__main__":
    unit_size = 512
    num_classes = 16

    key = jax.random.PRNGKey(0)
    kx_big, kx_small, kw_key, kb_key = jax.random.split(key, 4)

    # Deterministic synthetic parameters in PyTorch nn.Linear layout.
    weight = jax.random.normal(kw_key, (num_classes, unit_size), jnp.float32) * 0.02
    bias = jax.random.normal(kb_key, (num_classes,), jnp.float32) * 0.01

    # One-time parameter prep (hoisted out of the per-call path).
    params_f32 = prepare_classifier_params(weight, bias)
    params_bf16 = prepare_classifier_params(weight, bias, compute_dtype=jnp.bfloat16)

    # --- Pallas path (batch large enough to amortize launch overhead) --------
    x_big = jax.random.normal(kx_big, (256, unit_size), dtype=jnp.float32)
    y_ref = x_big @ weight.T + bias[None, :]

    y = jax.block_until_ready(res_classifier_forward(x_big, params_f32))
    assert y.shape == (256, num_classes) and y.dtype == jnp.float32
    assert jnp.allclose(y, y_ref, atol=5e-3, rtol=5e-3)

    # bf16 compute (in-kernel cast of x, f32 accumulation, f32 logits out).
    y16 = jax.block_until_ready(res_classifier_forward(x_big, params_bf16))
    assert y16.dtype == jnp.float32
    assert jnp.allclose(y16, y_ref, atol=5e-2, rtol=5e-2)

    # Padded-logit mode (skips the post-kernel slice); extra columns are 0.
    y_pad = jax.block_until_ready(
        res_classifier_forward(x_big, params_f32, slice_output=False))
    assert y_pad.shape == (256, 128)
    assert jnp.allclose(y_pad[:, :num_classes], y_ref, atol=5e-3, rtol=5e-3)
    assert jnp.all(y_pad[:, num_classes:] == 0.0)

    # --- tiny batch: wrapper dispatches to a plain XLA dot --------------------
    x_small = jax.random.normal(kx_small, (8, unit_size), dtype=jnp.float32)
    y_small = jax.block_until_ready(res_classifier_forward(x_small, params_f32))
    assert y_small.shape == (8, num_classes)
    assert jnp.allclose(y_small, x_small @ weight.T + bias[None, :],
                        atol=5e-3, rtol=5e-3)

    print("KERNEL_OK")
</pallas_src>

<mosaic_0001>
module attributes {stable_mosaic.version = 11 : i64} {
  func.func @_linear_bias_kernel(%arg0: i32, %arg1: memref<128x512xf32, #tpu.memory_space<vmem>>, %arg2: memref<512x128xf32, #tpu.memory_space<vmem>>, %arg3: memref<1x128xf32, #tpu.memory_space<vmem>>, %arg4: memref<128x128xf32, #tpu.memory_space<vmem>>) attributes {dimension_semantics = [#tpu.dimension_semantics<parallel>], iteration_bounds = array<i64: 2>, scalar_prefetch = 0 : i64, scratch_operands = 0 : i64, tpu.core_type = #tpu.core_type<tc>, window_params = [{transform_indices = @transform_0, window_bounds = array<i64: 128, 512>}, {pipeline_mode = #tpu.pipeline_mode<synchronous>, transform_indices = @transform_1, window_bounds = array<i64: 512, 128>}, {pipeline_mode = #tpu.pipeline_mode<synchronous>, transform_indices = @transform_2, window_bounds = array<i64: 1, 128>}, {transform_indices = @transform_3, window_bounds = array<i64: 128, 128>}]} {
    %c0 = arith.constant 0 : index
    %c0_0 = arith.constant 0 : index
    %0 = vector.load %arg1[%c0, %c0_0] : memref<128x512xf32, #tpu.memory_space<vmem>>, vector<128x512xf32>
    %c0_1 = arith.constant 0 : index
    %c0_2 = arith.constant 0 : index
    %1 = vector.load %arg2[%c0_1, %c0_2] : memref<512x128xf32, #tpu.memory_space<vmem>>, vector<512x128xf32>
    %cst = arith.constant dense<0.000000e+00> : vector<128x128xf32>
    %2 = tpu.matmul %0, %1, %cst {dimension_numbers = #tpu.dot_dimension_numbers<[1], [0], [0], [1], [0, 0, 1, 1], [], []>} : vector<128x512xf32>, vector<512x128xf32>, vector<128x128xf32> -> vector<128x128xf32>
    %c0_3 = arith.constant 0 : index
    %c0_4 = arith.constant 0 : index
    %3 = vector.load %arg3[%c0_3, %c0_4] : memref<1x128xf32, #tpu.memory_space<vmem>>, vector<1x128xf32>
    %4 = vector.broadcast %3 : vector<1x128xf32> to vector<128x128xf32>
    %5 = arith.addf %2, %4 : vector<128x128xf32>
    %c0_5 = arith.constant 0 : index
    %c0_6 = arith.constant 0 : index
    %6 = vector.load %arg4[%c0_5, %c0_6] : memref<128x128xf32, #tpu.memory_space<vmem>>, vector<128x128xf32>
    tpu.vector_store %arg4[%c0_5, %c0_6], %5 {strides = array<i32>} : memref<128x128xf32, #tpu.memory_space<vmem>>, vector<128x128xf32>,
    return
  }
  func.func @transform_0(%arg0: i32) -> (i32, i32) {
    %c0_i32 = arith.constant 0 : i32
    %c0_i32_0 = arith.constant 0 : i32
    return %arg0, %c0_i32 : i32, i32
  }
  func.func @transform_1(%arg0: i32) -> (i32, i32) {
    %c0_i32 = arith.constant 0 : i32
    %c0_i32_0 = arith.constant 0 : i32
    %c0_i32_1 = arith.constant 0 : i32
    return %c0_i32, %c0_i32_0 : i32, i32
  }
  func.func @transform_2(%arg0: i32) -> (i32, i32) {
    %c0_i32 = arith.constant 0 : i32
    %c0_i32_0 = arith.constant 0 : i32
    %c0_i32_1 = arith.constant 0 : i32
    return %c0_i32, %c0_i32_0 : i32, i32
  }
  func.func @transform_3(%arg0: i32) -> (i32, i32) {
    %c0_i32 = arith.constant 0 : i32
    %c0_i32_0 = arith.constant 0 : i32
    return %arg0, %c0_i32 : i32, i32
  }
}

module attributes {stable_mosaic.version = 11 : i64} {
  func.func @_linear_bias_kernel(%arg0: i32, %arg1: memref<128x512xf32, #tpu.memory_space<vmem>>, %arg2: memref<512x128xf32, #tpu.memory_space<vmem>>, %arg3: memref<1x128xf32, #tpu.memory_space<vmem>>, %arg4: memref<128x128xf32, #tpu.memory_space<vmem>>) attributes {dimension_semantics = [#tpu.dimension_semantics<parallel>], iteration_bounds = array<i64: 2>, scalar_prefetch = 0 : i64, scratch_operands = 0 : i64, tpu.core_type = #tpu.core_type<tc>, window_params = [{transform_indices = @transform_0, window_bounds = array<i64: 128, 512>}, {pipeline_mode = #tpu.pipeline_mode<synchronous>, transform_indices = @transform_1, window_bounds = array<i64: 512, 128>}, {pipeline_mode = #tpu.pipeline_mode<synchronous>, transform_indices = @transform_2, window_bounds = array<i64: 1, 128>}, {transform_indices = @transform_3, window_bounds = array<i64: 128, 128>}]} {
    %c0 = arith.constant 0 : index
    %c0_0 = arith.constant 0 : index
    %0 = vector.load %arg1[%c0, %c0_0] : memref<128x512xf32, #tpu.memory_space<vmem>>, vector<128x512xf32>
    %c0_1 = arith.constant 0 : index
    %c0_2 = arith.constant 0 : index
    %1 = vector.load %arg2[%c0_1, %c0_2] : memref<512x128xf32, #tpu.memory_space<vmem>>, vector<512x128xf32>
    %cst = arith.constant dense<0.000000e+00> : vector<128x128xf32>
    %2 = tpu.matmul %0, %1, %cst {dimension_numbers = #tpu.dot_dimension_numbers<[1], [0], [0], [1], [0, 0, 1, 1], [], []>} : vector<128x512xf32>, vector<512x128xf32>, vector<128x128xf32> -> vector<128x128xf32>
    %c0_3 = arith.constant 0 : index
    %c0_4 = arith.constant 0 : index
    %3 = vector.load %arg3[%c0_3, %c0_4] : memref<1x128xf32, #tpu.memory_space<vmem>>, vector<1x128xf32>
    %4 = vector.broadcast %3 : vector<1x128xf32> to vector<128x128xf32>
    %5 = arith.addf %2, %4 : vector<128x128xf32>
    %c0_5 = arith.constant 0 : index
    %c0_6 = arith.constant 0 : index
    %6 = vector.load %arg4[%c0_5, %c0_6] : memref<128x128xf32, #tpu.memory_space<vmem>>, vector<128x128xf32>
    tpu.vector_store %arg4[%c0_5, %c0_6], %5 {strides = array<i32>} : memref<128x128xf32, #tpu.memory_space<vmem>>, vector<128x128xf32>,
    return
  }
  func.func @transform_0(%arg0: i32) -> (i32, i32) {
    %c0_i32 = arith.constant 0 : i32
    %c0_i32_0 = arith.constant 0 : i32
    return %arg0, %c0_i32 : i32, i32
  }
  func.func @transform_1(%arg0: i32) -> (i32, i32) {
    %c0_i32 = arith.constant 0 : i32
    %c0_i32_0 = arith.constant 0 : i32
    %c0_i32_1 = arith.constant 0 : i32
    return %c0_i32, %c0_i32_0 : i32, i32
  }
  func.func @transform_2(%arg0: i32) -> (i32, i32) {
    %c0_i32 = arith.constant 0 : i32
    %c0_i32_0 = arith.constant 0 : i32
    %c0_i32_1 = arith.constant 0 : i32
    return %c0_i32, %c0_i32_0 : i32, i32
  }
  func.func @transform_3(%arg0: i32) -> (i32, i32) {
    %c0_i32 = arith.constant 0 : i32
    %c0_i32_0 = arith.constant 0 : i32
    return %arg0, %c0_i32 : i32, i32
  }
}

</mosaic_0001>

<llo_original>
// kernel: tpu_custom_call.1
$region0: #{tpu_custom_call.1}
  #allocation0 [shape = 'u32[]', space=smem, size = 0x4, offset = 0x4, fixed_abs, tag = 'smem constant byte address 0x4 - core index']
  #allocation1 [shape = 'u32[144,128]{1,0:T(1,128)}', space=vmem, size = 0x12000, scoped, tag = 'internal scratch']
  %s0 = inlined_call_operand.hbm [shape: f32[256,512], index: 0, kind: input, shape index: {}]
  %s1 = inlined_call_operand.hbm [shape: f32[512,128], index: 1, kind: input, shape index: {}]
  %s2 = inlined_call_operand.vmem [shape: f32[1,128], index: 2, kind: input, shape index: {}]
  %s3 = inlined_call_operand.hbm [shape: f32[256,128], index: 3, kind: output, shape index: {}]
  %s4 = sld [smem:[#allocation0]]
  $region53: #{tpu_custom_call.1} parent=0
    _
  %s6 = ssub.s32 1, %s4
  %s7 = scalar_select 0, %s6, %s4
  $region1: #{tpu_custom_call.1} parent=0
    #allocation2 [shape = 'u8[524288]{0}', space=vmem, size = 0x80000, scoped, tag = 'input window, operand 0']
    #allocation3 [shape = 's32[2]{0}', space=sflag, size = 0x8, scoped, tag = 'scoped memory for tpu_custom_call.1']
    #allocation4 [shape = 's32[2]{0}', space=sflag, size = 0x8, scoped, tag = 'scoped memory for tpu_custom_call.1']
    #allocation5 [shape = 'u8[262144]{0}', space=vmem, size = 0x40000, scoped, tag = 'input window, operand 1, single buffered']
    #allocation6 [shape = 's32[1]{0}', space=sflag, size = 0x4, scoped, tag = 'scoped memory for tpu_custom_call.1']
    #allocation7 [shape = 'u8[131072]{0}', space=vmem, size = 0x20000, scoped, tag = 'output window, operand 0']
    %8 = vsyncpa [#allocation3], 0
    %s9 = scalar_lea.sflag [#allocation3], 1
    %10 = vsyncpa %s9, 0
    %11 = vsyncpa [#allocation6], 0
    %12 = vsyncpa [#allocation4], 0
    %s13 = scalar_lea.sflag [#allocation4], 1
    %14 = vsyncpa %s13, 0
    loop: start=0, step=1, limit=4
    $region2: #{tpu_custom_call.1} parent=1 // loop_pre_header
      _
    $region3: #{tpu_custom_call.1} parent=1 // loop_header
      %s16 = sphi 0, %s20
      %p17 = scmp.ge.s32.totalorder %s16, 4
      %s26 = sphi 0, %s28
      %s29 = sphi 0, %s26
      %s30 = sphi 0, %s29
      %s46 = sphi 0, %s30
      %s50 = sphi 0, %s50
      %s52 = sphi 0, %s50
      %s53 = sphi 0, %s52
      %s67 = sphi 0, %s53
      %s71 = sphi 0, %s71
      %s73 = sphi 0, %s71
      %s74 = sphi 0, %s73
      %s88 = sphi 0, %s74
      %s94 = sphi 0, %s96
      %s97 = sphi 0, %s94
      %s98 = sphi 0, %s97
      %s114 = sphi 0, %s98
    $region4: #{tpu_custom_call.1} parent=1 // loop_header_branch
      %19 = sbr.rel (%p17) target = $region8
    $region5: #{tpu_custom_call.1} parent=1 // loop_body
      %s21 = ssub.s32 %s16, 1
      %s22 = ssub.s32 %s16, 2
      %s23 = sadd.s32 %s16, 1
      %s24 = ssub.s32 %s16, %s23
      %p25 = scmp.eq.s32.totalorder %s24, 0
      %s27 = sadd.s32 %s26, 1
      %s28 = scalar_select %p25, %s26, %s27
      %p31 = pneg %p25
      %p32 = scmp.eq.s32.totalorder %s16, 1
      %p33 = por %p31, %p32
      %p34 = scmp.ne.s32.totalorder %s26, %s29
      %p35 = scmp.eq.s32.totalorder %s16, 0
      %p36 = por %p34, %p35
      %p37 = scmp.ne.s32.totalorder %s26, %s29
      %p38 = scmp.eq.s32.totalorder %s21, 1
      %p39 = por %p37, %p38
      %p40 = scmp.ne.s32.totalorder %s29, %s30
      %p41 = scmp.eq.s32.totalorder %s21, 0
      %p42 = por %p40, %p41
      %p43 = scmp.ne.s32.totalorder %s29, %s30
      %p44 = scmp.eq.s32.totalorder %s22, 1
      %p45 = por %p43, %p44
      %p47 = scmp.ne.s32.totalorder %s30, %s46
      %p48 = scmp.eq.s32.totalorder %s22, 0
      %p49 = por %p47, %p48
      %s51 = sadd.s32 %s50, 1
      %p54 = scmp.eq.s32.totalorder %s16, 1
      %p55 = scmp.ne.s32.totalorder %s50, %s52
      %p56 = scmp.eq.s32.totalorder %s16, 0
      %p57 = por %p55, %p56
      %p58 = scmp.ne.s32.totalorder %s50, %s52
      %p59 = scmp.eq.s32.totalorder %s21, 1
      %p60 = por %p58, %p59
      %p61 = scmp.ne.s32.totalorder %s52, %s53
      %p62 = scmp.eq.s32.totalorder %s21, 0
      %p63 = por %p61, %p62
      %p64 = scmp.ne.s32.totalorder %s52, %s53
      %p65 = scmp.eq.s32.totalorder %s22, 1
      %p66 = por %p64, %p65
      %p68 = scmp.ne.s32.totalorder %s53, %s67
      %p69 = scmp.eq.s32.totalorder %s22, 0
      %p70 = por %p68, %p69
      %s72 = sadd.s32 %s71, 1
      %p75 = scmp.eq.s32.totalorder %s16, 1
      %p76 = scmp.ne.s32.totalorder %s71, %s73
      %p77 = scmp.eq.s32.totalorder %s16, 0
      %p78 = por %p76, %p77
      %p79 = scmp.ne.s32.totalorder %s71, %s73
      %p80 = scmp.eq.s32.totalorder %s21, 1
      %p81 = por %p79, %p80
      %p82 = scmp.ne.s32.totalorder %s73, %s74
      %p83 = scmp.eq.s32.totalorder %s21, 0
      %p84 = por %p82, %p83
      %p85 = scmp.ne.s32.totalorder %s73, %s74
      %p86 = scmp.eq.s32.totalorder %s22, 1
      %p87 = por %p85, %p86
      %p89 = scmp.ne.s32.totalorder %s74, %s88
      %p90 = scmp.eq.s32.totalorder %s22, 0
      %p91 = por %p89, %p90
      %s92 = ssub.s32 %s16, %s23
      %p93 = scmp.eq.s32.totalorder %s92, 0
      %s95 = sadd.s32 %s94, 1
      %s96 = scalar_select %p93, %s94, %s95
      %p99 = pneg %p93
      %p100 = scmp.eq.s32.totalorder %s16, 1
      %p101 = por %p99, %p100
      %p102 = scmp.ne.s32.totalorder %s94, %s97
      %p103 = scmp.eq.s32.totalorder %s16, 0
      %p104 = por %p102, %p103
      %p105 = scmp.ne.s32.totalorder %s94, %s97
      %p106 = scmp.eq.s32.totalorder %s21, 1
      %p107 = por %p105, %p106
      %p108 = scmp.ne.s32.totalorder %s97, %s98
      %p109 = scmp.eq.s32.totalorder %s21, 0
      %p110 = por %p108, %p109
      %p111 = scmp.ne.s32.totalorder %s97, %s98
      %p112 = scmp.eq.s32.totalorder %s22, 1
      %p113 = por %p111, %p112
      %p115 = scmp.ne.s32.totalorder %s98, %s114
      %p116 = scmp.eq.s32.totalorder %s22, 0
      %p117 = por %p115, %p116
      %p118 = scmp.le.s32.totalorder 1, %s16
      %p119 = scmp.lt.s32.totalorder %s16, 3
      %p120 = pnand %p118, %p119
      %p121 = pneg %p120
      // Predicated region
      $region9: #{tpu_custom_call.1} parent=5 // pred_check
        _
      $region10: #{tpu_custom_call.1} parent=5 // pred_check_branch
        %123 = sbr.rel (%p120) target = $region12
      $region11: #{tpu_custom_call.1} parent=5 // pred_region
        %s124 = ssub.s32 %s16, 1
        // Predicated region
        $region13: #{tpu_custom_call.1} parent=11 // pred_check
          %p125 = pneg %p63
        $region14: #{tpu_custom_call.1} parent=11 // pred_check_branch
          %127 = sbr.rel (%p125) target = $region16
        $region15: #{tpu_custom_call.1} parent=11 // pred_region
          %s129 = ssub.s32 8192, 8192
          %130 = vsyncadd [#allocation6], %s129
          %s131 = sshll.u32 [#allocation5], 4
          %s132 = int_to_ptr.vmem [resolvable:$true] %s131
          %137 = dma.hbm_to_vmem [thread:$0]  %s1, 8192, %s132, [#allocation6], 128, 128, 8
        $region16: #{tpu_custom_call.1} parent=11 // pred_fallthru
          _
        // Predicated region
        $region17: #{tpu_custom_call.1} parent=11 // pred_check
          %p138 = pneg %p84
        $region18: #{tpu_custom_call.1} parent=11 // pred_check_branch
          %140 = sbr.rel (%p138) target = $region20
        $region19: #{tpu_custom_call.1} parent=11 // pred_region
          _
        $region20: #{tpu_custom_call.1} parent=11 // pred_fallthru
          _
      $region12: #{tpu_custom_call.1} parent=5 // pred_fallthru
        _
      %p141 = scmp.lt.s32.totalorder %s16, 2
      // Predicated region
      $region21: #{tpu_custom_call.1} parent=5 // pred_check
        %p142 = pneg %p141
      $region22: #{tpu_custom_call.1} parent=5 // pred_check_branch
        %144 = sbr.rel (%p142) target = $region24
      $region23: #{tpu_custom_call.1} parent=5 // pred_region
        // Predicated region
        $region25: #{tpu_custom_call.1} parent=23 // pred_check
          %p145 = pneg %p36
        $region26: #{tpu_custom_call.1} parent=23 // pred_check_branch
          %147 = sbr.rel (%p145) target = $region28
        $region27: #{tpu_custom_call.1} parent=23 // pred_region
          %s148 = sand.u32 %s26, 1
          %s149 = scalar_lea.sflag [#allocation3], %s148
          %s150 = sand.u32 %s26, 1
          %s151 = smul.addr %s150, 512
          %s152 = scalar_lea.vmem [#allocation2], %s151
          %s153 = smul.u32 16, %s16
          %s155 = ssub.s32 8192, 8192
          %156 = vsyncadd %s149, %s155
          %s157 = smul.addr %s153, 4
          %s158 = smul.addr %s157, 128
          %s159 = scalar_lea.hbm %s0, %s158
          %s160 = sshll.u32 %s152, 4
          %s161 = int_to_ptr.vmem [resolvable:$true] %s160
          %166 = dma.hbm_to_vmem [thread:$0]  %s159, 8192, %s161, %s149, 512, 512, 32
        $region28: #{tpu_custom_call.1} parent=23 // pred_fallthru
          _
      $region24: #{tpu_custom_call.1} parent=5 // pred_fallthru
        _
      %p167 = scmp.le.s32.totalorder 1, %s16
      %p168 = scmp.lt.s32.totalorder %s16, 3
      %p169 = pnand %p167, %p168
      %p170 = pneg %p169
      // Predicated region
      $region29: #{tpu_custom_call.1} parent=5 // pred_check
        _
      $region30: #{tpu_custom_call.1} parent=5 // pred_check_branch
        %172 = sbr.rel (%p169) target = $region32
      $region31: #{tpu_custom_call.1} parent=5 // pred_region
        %s173 = ssub.s32 %s16, 1
        %s174 = sand.u32 %s29, 1
        %s175 = scalar_lea.sflag [#allocation3], %s174
        %s176 = sand.u32 %s29, 1
        %s177 = smul.addr %s176, 512
        %s178 = scalar_lea.vmem [#allocation2], %s177
        // Predicated region
        $region33: #{tpu_custom_call.1} parent=31 // pred_check
          %p179 = pneg %p42
        $region34: #{tpu_custom_call.1} parent=31 // pred_check_branch
          %181 = sbr.rel (%p179) target = $region36
        $region35: #{tpu_custom_call.1} parent=31 // pred_region
          %182 = dma.done %s175, 8192
        $region36: #{tpu_custom_call.1} parent=31 // pred_fallthru
          _
        // Predicated region
        $region37: #{tpu_custom_call.1} parent=31 // pred_check
          %p183 = pneg %p63
        $region38: #{tpu_custom_call.1} parent=31 // pred_check_branch
          %185 = sbr.rel (%p183) target = $region40
        $region39: #{tpu_custom_call.1} parent=31 // pred_region
          %186 = dma.done [#allocation6], 8192
        $region40: #{tpu_custom_call.1} parent=31 // pred_fallthru
          _
        %s187 = sand.u32 %s29, 1
        %s188 = scalar_lea.sflag [#allocation3], %s187
        %s189 = sand.u32 %s29, 1
        %s190 = smul.addr %s189, 512
        %s191 = scalar_lea.vmem [#allocation2], %s190
        %p192 = pneg %p42
        %p193 = pneg %p39
        %p194 = pneg %p63
        %p195 = pneg %p60
        %p196 = pneg %p84
        %p197 = pneg %p81
        %p198 = pneg %p110
        %p199 = pneg %p107
        %s200 = sand.u32 %s97, 1
        %s201 = scalar_lea.sflag [#allocation4], %s200
        %s202 = sand.u32 %s97, 1
        %s203 = smul.addr %s202, 128
        %s204 = scalar_lea.vmem [#allocation7], %s203
        %s205 = smul.u32 16, %s21
        %s206 = smul.u32 16, %s21
        %v207 = vld [vmem:[%s178] sm:$0xff]
        %v208 = vld [vmem:[%s178 + $0x8] sm:$0xff]
        %v209 = vld [vmem:[%s178 + $0x10] sm:$0xff]
        %v210 = vld [vmem:[%s178 + $0x18] sm:$0xff]
        %v211 = vld [vmem:[%s178 + $0x20] sm:$0xff]
        %v212 = vld [vmem:[%s178 + $0x28] sm:$0xff]
        %v213 = vld [vmem:[%s178 + $0x30] sm:$0xff]
        %v214 = vld [vmem:[%s178 + $0x38] sm:$0xff]
        %v215 = vld [vmem:[%s178 + $0x40] sm:$0xff]
        %v216 = vld [vmem:[%s178 + $0x48] sm:$0xff]
        %v217 = vld [vmem:[%s178 + $0x50] sm:$0xff]
        %v218 = vld [vmem:[%s178 + $0x58] sm:$0xff]
        %v219 = vld [vmem:[%s178 + $0x60] sm:$0xff]
        %v220 = vld [vmem:[%s178 + $0x68] sm:$0xff]
        %v221 = vld [vmem:[%s178 + $0x70] sm:$0xff]
        %v222 = vld [vmem:[%s178 + $0x78] sm:$0xff]
        %v223 = vld [vmem:[%s178 + $0x80] sm:$0xff]
        %v224 = vld [vmem:[%s178 + $0x88] sm:$0xff]
        %v225 = vld [vmem:[%s178 + $0x90] sm:$0xff]
        %v226 = vld [vmem:[%s178 + $0x98] sm:$0xff]
        %v227 = vld [vmem:[%s178 + $0xa0] sm:$0xff]
        %v228 = vld [vmem:[%s178 + $0xa8] sm:$0xff]
        %v229 = vld [vmem:[%s178 + $0xb0] sm:$0xff]
        %v230 = vld [vmem:[%s178 + $0xb8] sm:$0xff]
        %v231 = vld [vmem:[%s178 + $0xc0] sm:$0xff]
        %v232 = vld [vmem:[%s178 + $0xc8] sm:$0xff]
        %v233 = vld [vmem:[%s178 + $0xd0] sm:$0xff]
        %v234 = vld [vmem:[%s178 + $0xd8] sm:$0xff]
        %v235 = vld [vmem:[%s178 + $0xe0] sm:$0xff]
        %v236 = vld [vmem:[%s178 + $0xe8] sm:$0xff]
        %v237 = vld [vmem:[%s178 + $0xf0] sm:$0xff]
        %v238 = vld [vmem:[%s178 + $0xf8] sm:$0xff]
        %v239 = vld [vmem:[%s178 + $0x100] sm:$0xff]
        %v240 = vld [vmem:[%s178 + $0x108] sm:$0xff]
        %v241 = vld [vmem:[%s178 + $0x110] sm:$0xff]
        %v242 = vld [vmem:[%s178 + $0x118] sm:$0xff]
        %v243 = vld [vmem:[%s178 + $0x120] sm:$0xff]
        %v244 = vld [vmem:[%s178 + $0x128] sm:$0xff]
        %v245 = vld [vmem:[%s178 + $0x130] sm:$0xff]
        %v246 = vld [vmem:[%s178 + $0x138] sm:$0xff]
        %v247 = vld [vmem:[%s178 + $0x140] sm:$0xff]
        %v248 = vld [vmem:[%s178 + $0x148] sm:$0xff]
        %v249 = vld [vmem:[%s178 + $0x150] sm:$0xff]
        %v250 = vld [vmem:[%s178 + $0x158] sm:$0xff]
        %v251 = vld [vmem:[%s178 + $0x160] sm:$0xff]
        %v252 = vld [vmem:[%s178 + $0x168] sm:$0xff]
        %v253 = vld [vmem:[%s178 + $0x170] sm:$0xff]
        %v254 = vld [vmem:[%s178 + $0x178] sm:$0xff]
        %v255 = vld [vmem:[%s178 + $0x180] sm:$0xff]
        %v256 = vld [vmem:[%s178 + $0x188] sm:$0xff]
        %v257 = vld [vmem:[%s178 + $0x190] sm:$0xff]
        %v258 = vld [vmem:[%s178 + $0x198] sm:$0xff]
        %v259 = vld [vmem:[%s178 + $0x1a0] sm:$0xff]
        %v260 = vld [vmem:[%s178 + $0x1a8] sm:$0xff]
        %v261 = vld [vmem:[%s178 + $0x1b0] sm:$0xff]
        %v262 = vld [vmem:[%s178 + $0x1b8] sm:$0xff]
        %v263 = vld [vmem:[%s178 + $0x1c0] sm:$0xff]
        %v264 = vld [vmem:[%s178 + $0x1c8] sm:$0xff]
        %v265 = vld [vmem:[%s178 + $0x1d0] sm:$0xff]
        %v266 = vld [vmem:[%s178 + $0x1d8] sm:$0xff]
        %v267 = vld [vmem:[%s178 + $0x1e0] sm:$0xff]
        %v268 = vld [vmem:[%s178 + $0x1e8] sm:$0xff]
        %v269 = vld [vmem:[%s178 + $0x1f0] sm:$0xff]
        %v270 = vld [vmem:[%s178 + $0x1f8] sm:$0xff]
        %v271 = vld [vmem:[#allocation5] sm:$0xff]
        %v272 = vld [vmem:[#allocation5 + $0x8] sm:$0xff]
        %v273 = vld [vmem:[#allocation5 + $0x10] sm:$0xff]
        %v274 = vld [vmem:[#allocation5 + $0x18] sm:$0xff]
        %v275 = vld [vmem:[#allocation5 + $0x20] sm:$0xff]
        %v276 = vld [vmem:[#allocation5 + $0x28] sm:$0xff]
        %v277 = vld [vmem:[#allocation5 + $0x30] sm:$0xff]
        %v278 = vld [vmem:[#allocation5 + $0x38] sm:$0xff]
        %v279 = vld [vmem:[#allocation5 + $0x40] sm:$0xff]
        %v280 = vld [vmem:[#allocation5 + $0x48] sm:$0xff]
        %v281 = vld [vmem:[#allocation5 + $0x50] sm:$0xff]
        %v282 = vld [vmem:[#allocation5 + $0x58] sm:$0xff]
        %v283 = vld [vmem:[#allocation5 + $0x60] sm:$0xff]
        %v284 = vld [vmem:[#allocation5 + $0x68] sm:$0xff]
        %v285 = vld [vmem:[#allocation5 + $0x70] sm:$0xff]
        %v286 = vld [vmem:[#allocation5 + $0x78] sm:$0xff]
        %v287 = vld [vmem:[#allocation5 + $0x80] sm:$0xff]
        %v288 = vld [vmem:[#allocation5 + $0x88] sm:$0xff]
        %v289 = vld [vmem:[#allocation5 + $0x90] sm:$0xff]
        %v290 = vld [vmem:[#allocation5 + $0x98] sm:$0xff]
        %v291 = vld [vmem:[#allocation5 + $0xa0] sm:$0xff]
        %v292 = vld [vmem:[#allocation5 + $0xa8] sm:$0xff]
        %v293 = vld [vmem:[#allocation5 + $0xb0] sm:$0xff]
        %v294 = vld [vmem:[#allocation5 + $0xb8] sm:$0xff]
        %v295 = vld [vmem:[#allocation5 + $0xc0] sm:$0xff]
        %v296 = vld [vmem:[#allocation5 + $0xc8] sm:$0xff]
        %v297 = vld [vmem:[#allocation5 + $0xd0] sm:$0xff]
        %v298 = vld [vmem:[#allocation5 + $0xd8] sm:$0xff]
        %v299 = vld [vmem:[#allocation5 + $0xe0] sm:$0xff]
        %v300 = vld [vmem:[#allocation5 + $0xe8] sm:$0xff]
        %v301 = vld [vmem:[#allocation5 + $0xf0] sm:$0xff]
        %v302 = vld [vmem:[#allocation5 + $0xf8] sm:$0xff]
        %v303 = vld [vmem:[#allocation5 + $0x100] sm:$0xff]
        %v304 = vld [vmem:[#allocation5 + $0x108] sm:$0xff]
        %v305 = vld [vmem:[#allocation5 + $0x110] sm:$0xff]
        %v306 = vld [vmem:[#allocation5 + $0x118] sm:$0xff]
        %v307 = vld [vmem:[#allocation5 + $0x120] sm:$0xff]
        %v308 = vld [vmem:[#allocation5 + $0x128] sm:$0xff]
        %v309 = vld [vmem:[#allocation5 + $0x130] sm:$0xff]
        %v310 = vld [vmem:[#allocation5 + $0x138] sm:$0xff]
        %v311 = vld [vmem:[#allocation5 + $0x140] sm:$0xff]
        %v312 = vld [vmem:[#allocation5 + $0x148] sm:$0xff]
        %v313 = vld [vmem:[#allocation5 + $0x150] sm:$0xff]
        %v314 = vld [vmem:[#allocation5 + $0x158] sm:$0xff]
        %v315 = vld [vmem:[#allocation5 + $0x160] sm:$0xff]
        %v316 = vld [vmem:[#allocation5 + $0x168] sm:$0xff]
        %v317 = vld [vmem:[#allocation5 + $0x170] sm:$0xff]
        %v318 = vld [vmem:[#allocation5 + $0x178] sm:$0xff]
        %v319 = vld [vmem:[#allocation5 + $0x180] sm:$0xff]
        %v320 = vld [vmem:[#allocation5 + $0x188] sm:$0xff]
        %v321 = vld [vmem:[#allocation5 + $0x190] sm:$0xff]
        %v322 = vld [vmem:[#allocation5 + $0x198] sm:$0xff]
        %v323 = vld [vmem:[#allocation5 + $0x1a0] sm:$0xff]
        %v324 = vld [vmem:[#allocation5 + $0x1a8] sm:$0xff]
        %v325 = vld [vmem:[#allocation5 + $0x1b0] sm:$0xff]
        %v326 = vld [vmem:[#allocation5 + $0x1b8] sm:$0xff]
        %v327 = vld [vmem:[#allocation5 + $0x1c0] sm:$0xff]
        %v328 = vld [vmem:[#allocation5 + $0x1c8] sm:$0xff]
        %v329 = vld [vmem:[#allocation5 + $0x1d0] sm:$0xff]
        %v330 = vld [vmem:[#allocation5 + $0x1d8] sm:$0xff]
        %v331 = vld [vmem:[#allocation5 + $0x1e0] sm:$0xff]
        %v332 = vld [vmem:[#allocation5 + $0x1e8] sm:$0xff]
        %v333 = vld [vmem:[#allocation5 + $0x1f0] sm:$0xff]
        %v334 = vld [vmem:[#allocation5 + $0x1f8] sm:$0xff]
        %v335 = vld [vmem:[%s2] sm:$0x1]
        %v337 = vlaneseq
        %v338 = vshrl.u32 %v337, 7
        %v339 = vsub.s32 0, %v338
        %v340 = vrot.slane %v335, %v339
        %342 = vmatprep.subr.mxu0 0.0
        %343 = vmatpush1.msra.mxu0 %v286
        %344 = vmatprep.subr.mxu0 0.0
        %345 = vmatpush1.msra.mxu0 %v285
        %346 = vmatprep.subr.mxu0 0.0
        %347 = vmatpush1.msra.mxu0 %v284
        %348 = vmatprep.subr.mxu0 0.0
        %349 = vmatpush1.msra.mxu0 %v283
        %350 = vmatprep.subr.mxu0 0.0
        %351 = vmatpush1.msra.mxu0 %v282
        %352 = vmatprep.subr.mxu0 0.0
        %353 = vmatpush1.msra.mxu0 %v281
        %354 = vmatprep.subr.mxu0 0.0
        %355 = vmatpush1.msra.mxu0 %v280
        %356 = vmatprep.subr.mxu0 0.0
        %357 = vmatpush1.msra.mxu0 %v279
        %358 = vmatprep.subr.mxu0 0.0
        %359 = vmatpush1.msra.mxu0 %v278
        %360 = vmatprep.subr.mxu0 0.0
        %361 = vmatpush1.msra.mxu0 %v277
        %362 = vmatprep.subr.mxu0 0.0
        %363 = vmatpush1.msra.mxu0 %v276
        %364 = vmatprep.subr.mxu0 0.0
        %365 = vmatpush1.msra.mxu0 %v275
        %366 = vmatprep.subr.mxu0 0.0
        %367 = vmatpush1.msra.mxu0 %v274
        %368 = vmatprep.subr.mxu0 0.0
        %369 = vmatpush1.msra.mxu0 %v273
        %370 = vmatprep.subr.mxu0 0.0
        %371 = vmatpush1.msra.mxu0 %v272
        %372 = vmatprep.subr.mxu0 0.0
        %373 = vmatpush1.msra.mxu0 %v271
        %374 = vmatprep.subr.mxu0 0.0
        %375 = vmatpush2.msra.mxu0 %v302
        %376 = vmatprep.subr.mxu0 0.0
        %377 = vmatpush2.msra.mxu0 %v301
        %378 = vmatprep.subr.mxu0 0.0
        %379 = vmatpush2.msra.mxu0 %v300
        %380 = vmatprep.subr.mxu0 0.0
        %381 = vmatpush2.msra.mxu0 %v299
        %382 = vmatprep.subr.mxu0 0.0
        %383 = vmatpush2.msra.mxu0 %v298
        %384 = vmatprep.subr.mxu0 0.0
        %385 = vmatpush2.msra.mxu0 %v297
        %386 = vmatprep.subr.mxu0 0.0
        %387 = vmatpush2.msra.mxu0 %v296
        %388 = vmatprep.subr.mxu0 0.0
        %389 = vmatpush2.msra.mxu0 %v295
        %390 = vmatprep.subr.mxu0 0.0
        %391 = vmatpush2.msra.mxu0 %v294
        %392 = vmatprep.subr.mxu0 0.0
        %393 = vmatpush2.msra.mxu0 %v293
        %394 = vmatprep.subr.mxu0 0.0
        %395 = vmatpush2.msra.mxu0 %v292
        %396 = vmatprep.subr.mxu0 0.0
        %397 = vmatpush2.msra.mxu0 %v291
        %398 = vmatprep.subr.mxu0 0.0
        %399 = vmatpush2.msra.mxu0 %v290
        %400 = vmatprep.subr.mxu0 0.0
        %401 = vmatpush2.msra.mxu0 %v289
        %402 = vmatprep.subr.mxu0 0.0
        %403 = vmatpush2.msra.mxu0 %v288
        %404 = vmatprep.subr.mxu0 0.0
        %405 = vmatpush2.msra.mxu0 %v287
        %406 = vmatprep.mubr.f32.mxu0 %v208
        %407 = vmatmul.mubr.f32.gmra.mxu0 %v207
        %v408 = vpop.f32.mrf.mxu0
        %v409 = vadd.f32 %v340, %v408
        %v410 = vpop.f32.mrf.mxu0
        %411 = vmatprep.mubr.f32.mxu0 %v212
        %412 = vmatmul.mubr.f32.gmra.mxu0 %v211
        %v413 = vpop.f32.mrf.mxu0
        %v414 = vadd.f32 %v340, %v413
        %v415 = vpop.f32.mrf.mxu0
        %416 = vmatprep.mubr.f32.mxu0 %v216
        %417 = vmatmul.mubr.f32.gmra.mxu0 %v215
        %v418 = vpop.f32.mrf.mxu0
        %v419 = vadd.f32 %v340, %v418
        %v420 = vpop.f32.mrf.mxu0
        %421 = vmatprep.mubr.f32.mxu0 %v220
        %422 = vmatmul.mubr.f32.gmra.mxu0 %v219
        %v423 = vpop.f32.mrf.mxu0
        %v424 = vadd.f32 %v340, %v423
        %v425 = vpop.f32.mrf.mxu0
        %426 = vmatprep.mubr.f32.mxu0 %v224
        %427 = vmatmul.mubr.f32.gmra.mxu0 %v223
        %v428 = vpop.f32.mrf.mxu0
        %v429 = vadd.f32 %v340, %v428
        %v430 = vpop.f32.mrf.mxu0
        %431 = vmatprep.mubr.f32.mxu0 %v228
        %432 = vmatmul.mubr.f32.gmra.mxu0 %v227
        %v433 = vpop.f32.mrf.mxu0
        %v434 = vadd.f32 %v340, %v433
        %v435 = vpop.f32.mrf.mxu0
        %436 = vmatprep.mubr.f32.mxu0 %v232
        %437 = vmatmul.mubr.f32.gmra.mxu0 %v231
        %v438 = vpop.f32.mrf.mxu0
        %v439 = vadd.f32 %v340, %v438
        %v440 = vpop.f32.mrf.mxu0
        %441 = vmatprep.mubr.f32.mxu0 %v236
        %442 = vmatmul.mubr.f32.gmra.mxu0 %v235
        %v443 = vpop.f32.mrf.mxu0
        %v444 = vadd.f32 %v340, %v443
        %v445 = vpop.f32.mrf.mxu0
        %446 = vmatprep.mubr.f32.mxu0 %v240
        %447 = vmatmul.mubr.f32.gmra.mxu0 %v239
        %v448 = vpop.f32.mrf.mxu0
        %v449 = vadd.f32 %v340, %v448
        %v450 = vpop.f32.mrf.mxu0
        %451 = vmatprep.mubr.f32.mxu0 %v244
        %452 = vmatmul.mubr.f32.gmra.mxu0 %v243
        %v453 = vpop.f32.mrf.mxu0
        %v454 = vadd.f32 %v340, %v453
        %v455 = vpop.f32.mrf.mxu0
        %456 = vmatprep.mubr.f32.mxu0 %v248
        %457 = vmatmul.mubr.f32.gmra.mxu0 %v247
        %v458 = vpop.f32.mrf.mxu0
        %v459 = vadd.f32 %v340, %v458
        %v460 = vpop.f32.mrf.mxu0
        %461 = vmatprep.mubr.f32.mxu0 %v252
        %462 = vmatmul.mubr.f32.gmra.mxu0 %v251
        %v463 = vpop.f32.mrf.mxu0
        %v464 = vadd.f32 %v340, %v463
        %v465 = vpop.f32.mrf.mxu0
        %466 = vmatprep.mubr.f32.mxu0 %v256
        %467 = vmatmul.mubr.f32.gmra.mxu0 %v255
        %v468 = vpop.f32.mrf.mxu0
        %v469 = vadd.f32 %v340, %v468
        %v470 = vpop.f32.mrf.mxu0
        %471 = vmatprep.mubr.f32.mxu0 %v260
        %472 = vmatmul.mubr.f32.gmra.mxu0 %v259
        %v473 = vpop.f32.mrf.mxu0
        %v474 = vadd.f32 %v340, %v473
        %v475 = vpop.f32.mrf.mxu0
        %476 = vmatprep.mubr.f32.mxu0 %v264
        %477 = vmatmul.mubr.f32.gmra.mxu0 %v263
        %v478 = vpop.f32.mrf.mxu0
        %v479 = vadd.f32 %v340, %v478
        %v480 = vpop.f32.mrf.mxu0
        %481 = vmatprep.mubr.f32.mxu0 %v268
        %482 = vmatmul.mubr.f32.gmra.mxu0 %v267
        %v483 = vpop.f32.mrf.mxu0
        %v484 = vadd.f32 %v340, %v483
        %v485 = vpop.f32.mrf.mxu0
        %486 = vdwg.mxu0
        %487 = vmatprep.subr.mxu0 0.0
        %488 = vmatpush1.msra.mxu0 %v318
        %489 = vmatprep.subr.mxu0 0.0
        %490 = vmatpush1.msra.mxu0 %v317
        %491 = vmatprep.subr.mxu0 0.0
        %492 = vmatpush1.msra.mxu0 %v316
        %493 = vmatprep.subr.mxu0 0.0
        %494 = vmatpush1.msra.mxu0 %v315
        %495 = vmatprep.subr.mxu0 0.0
        %496 = vmatpush1.msra.mxu0 %v314
        %497 = vmatprep.subr.mxu0 0.0
        %498 = vmatpush1.msra.mxu0 %v313
        %499 = vmatprep.subr.mxu0 0.0
        %500 = vmatpush1.msra.mxu0 %v312
        %501 = vmatprep.subr.mxu0 0.0
        %502 = vmatpush1.msra.mxu0 %v311
        %503 = vmatprep.subr.mxu0 0.0
        %504 = vmatpush1.msra.mxu0 %v310
        %505 = vmatprep.subr.mxu0 0.0
        %506 = vmatpush1.msra.mxu0 %v309
        %507 = vmatprep.subr.mxu0 0.0
        %508 = vmatpush1.msra.mxu0 %v308
        %509 = vmatprep.subr.mxu0 0.0
        %510 = vmatpush1.msra.mxu0 %v307
        %511 = vmatprep.subr.mxu0 0.0
        %512 = vmatpush1.msra.mxu0 %v306
        %513 = vmatprep.subr.mxu0 0.0
        %514 = vmatpush1.msra.mxu0 %v305
        %515 = vmatprep.subr.mxu0 0.0
        %516 = vmatpush1.msra.mxu0 %v304
        %517 = vmatprep.subr.mxu0 0.0
        %518 = vmatpush1.msra.mxu0 %v303
        %519 = vmatprep.subr.mxu0 0.0
        %520 = vmatpush2.msra.mxu0 %v334
        %521 = vmatprep.subr.mxu0 0.0
        %522 = vmatpush2.msra.mxu0 %v333
        %523 = vmatprep.subr.mxu0 0.0
        %524 = vmatpush2.msra.mxu0 %v332
        %525 = vmatprep.subr.mxu0 0.0
        %526 = vmatpush2.msra.mxu0 %v331
        %527 = vmatprep.subr.mxu0 0.0
        %528 = vmatpush2.msra.mxu0 %v330
        %529 = vmatprep.subr.mxu0 0.0
        %530 = vmatpush2.msra.mxu0 %v329
        %531 = vmatprep.subr.mxu0 0.0
        %532 = vmatpush2.msra.mxu0 %v328
        %533 = vmatprep.subr.mxu0 0.0
        %534 = vmatpush2.msra.mxu0 %v327
        %535 = vmatprep.subr.mxu0 0.0
        %536 = vmatpush2.msra.mxu0 %v326
        %537 = vmatprep.subr.mxu0 0.0
        %538 = vmatpush2.msra.mxu0 %v325
        %539 = vmatprep.subr.mxu0 0.0
        %540 = vmatpush2.msra.mxu0 %v324
        %541 = vmatprep.subr.mxu0 0.0
        %542 = vmatpush2.msra.mxu0 %v323
        %543 = vmatprep.subr.mxu0 0.0
        %544 = vmatpush2.msra.mxu0 %v322
        %545 = vmatprep.subr.mxu0 0.0
        %546 = vmatpush2.msra.mxu0 %v321
        %547 = vmatprep.subr.mxu0 0.0
        %548 = vmatpush2.msra.mxu0 %v320
        %549 = vmatprep.subr.mxu0 0.0
        %550 = vmatpush2.msra.mxu0 %v319
        %551 = vmatprep.mubr.f32.mxu0 %v210
        %552 = vmatmul.mubr.f32.gmra.mxu0 %v209
        %v553 = vpop.f32.mrf.mxu0
        %v554 = vadd.f32 %v409, %v553
        %v555 = vpop.f32.mrf.mxu0
        %556 = vmatprep.mubr.f32.mxu0 %v214
        %557 = vmatmul.mubr.f32.gmra.mxu0 %v213
        %v558 = vpop.f32.mrf.mxu0
        %v559 = vadd.f32 %v414, %v558
        %v560 = vpop.f32.mrf.mxu0
        %561 = vmatprep.mubr.f32.mxu0 %v218
        %562 = vmatmul.mubr.f32.gmra.mxu0 %v217
        %v563 = vpop.f32.mrf.mxu0
        %v564 = vadd.f32 %v419, %v563
        %v565 = vpop.f32.mrf.mxu0
        %566 = vmatprep.mubr.f32.mxu0 %v222
        %567 = vmatmul.mubr.f32.gmra.mxu0 %v221
        %v568 = vpop.f32.mrf.mxu0
        %v569 = vadd.f32 %v424, %v568
        %v570 = vpop.f32.mrf.mxu0
        %571 = vmatprep.mubr.f32.mxu0 %v226
        %572 = vmatmul.mubr.f32.gmra.mxu0 %v225
        %v573 = vpop.f32.mrf.mxu0
        %v574 = vadd.f32 %v429, %v573
        %v575 = vpop.f32.mrf.mxu0
        %576 = vmatprep.mubr.f32.mxu0 %v230
        %577 = vmatmul.mubr.f32.gmra.mxu0 %v229
        %v578 = vpop.f32.mrf.mxu0
        %v579 = vadd.f32 %v434, %v578
        %v580 = vpop.f32.mrf.mxu0
        %581 = vmatprep.mubr.f32.mxu0 %v234
        %582 = vmatmul.mubr.f32.gmra.mxu0 %v233
        %v583 = vpop.f32.mrf.mxu0
        %v584 = vadd.f32 %v439, %v583
        %v585 = vpop.f32.mrf.mxu0
        %586 = vmatprep.mubr.f32.mxu0 %v238
        %587 = vmatmul.mubr.f32.gmra.mxu0 %v237
        %v588 = vpop.f32.mrf.mxu0
        %v589 = vadd.f32 %v444, %v588
        %v590 = vpop.f32.mrf.mxu0
        %591 = vmatprep.mubr.f32.mxu0 %v242
        %592 = vmatmul.mubr.f32.gmra.mxu0 %v241
        %v593 = vpop.f32.mrf.mxu0
        %v594 = vadd.f32 %v449, %v593
        %v595 = vpop.f32.mrf.mxu0
        %596 = vmatprep.mubr.f32.mxu0 %v246
        %597 = vmatmul.mubr.f32.gmra.mxu0 %v245
        %v598 = vpop.f32.mrf.mxu0
        %v599 = vadd.f32 %v454, %v598
        %v600 = vpop.f32.mrf.mxu0
        %601 = vmatprep.mubr.f32.mxu0 %v250
        %602 = vmatmul.mubr.f32.gmra.mxu0 %v249
        %v603 = vpop.f32.mrf.mxu0
        %v604 = vadd.f32 %v459, %v603
        %v605 = vpop.f32.mrf.mxu0
        %606 = vmatprep.mubr.f32.mxu0 %v254
        %607 = vmatmul.mubr.f32.gmra.mxu0 %v253
        %v608 = vpop.f32.mrf.mxu0
        %v609 = vadd.f32 %v464, %v608
        %v610 = vpop.f32.mrf.mxu0
        %611 = vmatprep.mubr.f32.mxu0 %v258
        %612 = vmatmul.mubr.f32.gmra.mxu0 %v257
        %v613 = vpop.f32.mrf.mxu0
        %v614 = vadd.f32 %v469, %v613
        %v615 = vpop.f32.mrf.mxu0
        %616 = vmatprep.mubr.f32.mxu0 %v262
        %617 = vmatmul.mubr.f32.gmra.mxu0 %v261
        %v618 = vpop.f32.mrf.mxu0
        %v619 = vadd.f32 %v474, %v618
        %v620 = vpop.f32.mrf.mxu0
        %621 = vmatprep.mubr.f32.mxu0 %v266
        %622 = vmatmul.mubr.f32.gmra.mxu0 %v265
        %v623 = vpop.f32.mrf.mxu0
        %v624 = vadd.f32 %v479, %v623
        %v625 = vpop.f32.mrf.mxu0
        %626 = vmatprep.mubr.f32.mxu0 %v270
        %627 = vmatmul.mubr.f32.gmra.mxu0 %v269
        %v628 = vpop.f32.mrf.mxu0
        %v629 = vadd.f32 %v484, %v628
        %v630 = vpop.f32.mrf.mxu0
        %631 = vdwg.mxu0
        %632 = vst [vmem:[%s204] sm:$0xff] %v554
        %633 = vst [vmem:[%s204 + $0x8] sm:$0xff] %v559
        %634 = vst [vmem:[%s204 + $0x10] sm:$0xff] %v564
        %635 = vst [vmem:[%s204 + $0x18] sm:$0xff] %v569
        %636 = vst [vmem:[%s204 + $0x20] sm:$0xff] %v574
        %637 = vst [vmem:[%s204 + $0x28] sm:$0xff] %v579
        %638 = vst [vmem:[%s204 + $0x30] sm:$0xff] %v584
        %639 = vst [vmem:[%s204 + $0x38] sm:$0xff] %v589
        %640 = vst [vmem:[%s204 + $0x40] sm:$0xff] %v594
        %641 = vst [vmem:[%s204 + $0x48] sm:$0xff] %v599
        %642 = vst [vmem:[%s204 + $0x50] sm:$0xff] %v604
        %643 = vst [vmem:[%s204 + $0x58] sm:$0xff] %v609
        %644 = vst [vmem:[%s204 + $0x60] sm:$0xff] %v614
        %645 = vst [vmem:[%s204 + $0x68] sm:$0xff] %v619
        %646 = vst [vmem:[%s204 + $0x70] sm:$0xff] %v624
        %647 = vst [vmem:[%s204 + $0x78] sm:$0xff] %v629
        %s648 = sand.u32 %s97, 1
        %s649 = scalar_lea.sflag [#allocation4], %s648
        %s650 = sand.u32 %s97, 1
        %s651 = smul.addr %s650, 128
        %s652 = scalar_lea.vmem [#allocation7], %s651
        // Predicated region
        $region41: #{tpu_custom_call.1} parent=31 // pred_check
          %p653 = pneg %p107
        $region42: #{tpu_custom_call.1} parent=31 // pred_check_branch
          %655 = sbr.rel (%p653) target = $region44
        $region43: #{tpu_custom_call.1} parent=31 // pred_region
          %s656 = smul.u32 16, %s21
          %s658 = ssub.s32 2048, 2048
          %659 = vsyncadd %s649, %s658
          %s660 = smul.addr %s656, 128
          %s661 = scalar_lea.hbm %s3, %s660
          %s662 = sshll.u32 %s652, 4
          %s663 = int_to_ptr.vmem [resolvable:$true] %s662
          %668 = dma.vmem_to_hbm [thread:$0]  %s663, 2048, %s661, %s649, 128, 128, 8
        $region44: #{tpu_custom_call.1} parent=31 // pred_fallthru
          _
      $region32: #{tpu_custom_call.1} parent=5 // pred_fallthru
        _
      %p669 = scmp.le.s32.totalorder 2, %s16
      // Predicated region
      $region45: #{tpu_custom_call.1} parent=5 // pred_check
        %p670 = pneg %p669
      $region46: #{tpu_custom_call.1} parent=5 // pred_check_branch
        %672 = sbr.rel (%p670) target = $region48
      $region47: #{tpu_custom_call.1} parent=5 // pred_region
        %s673 = ssub.s32 %s16, 2
        // Predicated region
        $region49: #{tpu_custom_call.1} parent=47 // pred_check
          %p674 = pneg %p113
        $region50: #{tpu_custom_call.1} parent=47 // pred_check_branch
          %676 = sbr.rel (%p674) target = $region52
        $region51: #{tpu_custom_call.1} parent=47 // pred_region
          %s677 = sand.u32 %s98, 1
          %s678 = scalar_lea.sflag [#allocation4], %s677
          %s679 = sand.u32 %s98, 1
          %s680 = smul.addr %s679, 128
          %s681 = scalar_lea.vmem [#allocation7], %s680
          %682 = dma.done %s678, 2048
        $region52: #{tpu_custom_call.1} parent=47 // pred_fallthru
          _
      $region48: #{tpu_custom_call.1} parent=5 // pred_fallthru
        _
    $region6: #{tpu_custom_call.1} parent=1 // loop_footer
      %s20 = sadd.s32 1, %s16
    $region7: #{tpu_custom_call.1} parent=1 // loop_footer_branch
      %15 = sbr.rel target = $region3
    $region8: #{tpu_custom_call.1} parent=1 // loop_exit
      _
    %683 = vsyncpa [#allocation3], 1
    %s684 = scalar_lea.sflag [#allocation3], 1
    %685 = vsyncpa %s684, 1
    %686 = vsyncpa [#allocation6], 1
    %687 = vsyncpa [#allocation4], 1
    %s688 = scalar_lea.sflag [#allocation4], 1
    %689 = vsyncpa %s688, 1

// kernel: tpu_custom_call.1
$region0: #{tpu_custom_call.1}
  #allocation0 [shape = 'u32[]', space=smem, size = 0x4, offset = 0x4, fixed_abs, tag = 'smem constant byte address 0x4 - core index']
  #allocation1 [shape = 'u32[144,128]{1,0:T(1,128)}', space=vmem, size = 0x12000, scoped, tag = 'internal scratch']
  %s0 = inlined_call_operand.hbm [shape: f32[256,512], index: 0, kind: input, shape index: {}]
  %s1 = inlined_call_operand.hbm [shape: f32[512,128], index: 1, kind: input, shape index: {}]
  %s2 = inlined_call_operand.vmem [shape: f32[1,128], index: 2, kind: input, shape index: {}]
  %s3 = inlined_call_operand.hbm [shape: f32[256,128], index: 3, kind: output, shape index: {}]
  %s4 = sld [smem:[#allocation0]]
  $region53: #{tpu_custom_call.1} parent=0
    _
  %s6 = ssub.s32 1, %s4
  %s7 = scalar_select 0, %s6, %s4
  $region1: #{tpu_custom_call.1} parent=0
    #allocation2 [shape = 'u8[524288]{0}', space=vmem, size = 0x80000, scoped, tag = 'input window, operand 0']
    #allocation3 [shape = 's32[2]{0}', space=sflag, size = 0x8, scoped, tag = 'scoped memory for tpu_custom_call.1']
    #allocation4 [shape = 's32[2]{0}', space=sflag, size = 0x8, scoped, tag = 'scoped memory for tpu_custom_call.1']
    #allocation5 [shape = 'u8[262144]{0}', space=vmem, size = 0x40000, scoped, tag = 'input window, operand 1, single buffered']
    #allocation6 [shape = 's32[1]{0}', space=sflag, size = 0x4, scoped, tag = 'scoped memory for tpu_custom_call.1']
    #allocation7 [shape = 'u8[131072]{0}', space=vmem, size = 0x20000, scoped, tag = 'output window, operand 0']
    %8 = vsyncpa [#allocation3], 0
    %s9 = scalar_lea.sflag [#allocation3], 1
    %10 = vsyncpa %s9, 0
    %11 = vsyncpa [#allocation6], 0
    %12 = vsyncpa [#allocation4], 0
    %s13 = scalar_lea.sflag [#allocation4], 1
    %14 = vsyncpa %s13, 0
    loop: start=0, step=1, limit=4
    $region2: #{tpu_custom_call.1} parent=1 // loop_pre_header
      _
    $region3: #{tpu_custom_call.1} parent=1 // loop_header
      %s16 = sphi 0, %s20
      %p17 = scmp.ge.s32.totalorder %s16, 4
      %s26 = sphi 0, %s28
      %s29 = sphi 0, %s26
      %s30 = sphi 0, %s29
      %s46 = sphi 0, %s30
      %s50 = sphi 0, %s50
      %s52 = sphi 0, %s50
      %s53 = sphi 0, %s52
      %s67 = sphi 0, %s53
      %s71 = sphi 0, %s71
      %s73 = sphi 0, %s71
      %s74 = sphi 0, %s73
      %s88 = sphi 0, %s74
      %s94 = sphi 0, %s96
      %s97 = sphi 0, %s94
      %s98 = sphi 0, %s97
      %s114 = sphi 0, %s98
    $region4: #{tpu_custom_call.1} parent=1 // loop_header_branch
      %19 = sbr.rel (%p17) target = $region8
    $region5: #{tpu_custom_call.1} parent=1 // loop_body
      %s21 = ssub.s32 %s16, 1
      %s22 = ssub.s32 %s16, 2
      %s23 = sadd.s32 %s16, 1
      %s24 = ssub.s32 %s16, %s23
      %p25 = scmp.eq.s32.totalorder %s24, 0
      %s27 = sadd.s32 %s26, 1
      %s28 = scalar_select %p25, %s26, %s27
      %p31 = pneg %p25
      %p32 = scmp.eq.s32.totalorder %s16, 1
      %p33 = por %p31, %p32
      %p34 = scmp.ne.s32.totalorder %s26, %s29
      %p35 = scmp.eq.s32.totalorder %s16, 0
      %p36 = por %p34, %p35
      %p37 = scmp.ne.s32.totalorder %s26, %s29
      %p38 = scmp.eq.s32.totalorder %s21, 1
      %p39 = por %p37, %p38
      %p40 = scmp.ne.s32.totalorder %s29, %s30
      %p41 = scmp.eq.s32.totalorder %s21, 0
      %p42 = por %p40, %p41
      %p43 = scmp.ne.s32.totalorder %s29, %s30
      %p44 = scmp.eq.s32.totalorder %s22, 1
      %p45 = por %p43, %p44
      %p47 = scmp.ne.s32.totalorder %s30, %s46
      %p48 = scmp.eq.s32.totalorder %s22, 0
      %p49 = por %p47, %p48
      %s51 = sadd.s32 %s50, 1
      %p54 = scmp.eq.s32.totalorder %s16, 1
      %p55 = scmp.ne.s32.totalorder %s50, %s52
      %p56 = scmp.eq.s32.totalorder %s16, 0
      %p57 = por %p55, %p56
      %p58 = scmp.ne.s32.totalorder %s50, %s52
      %p59 = scmp.eq.s32.totalorder %s21, 1
      %p60 = por %p58, %p59
      %p61 = scmp.ne.s32.totalorder %s52, %s53
      %p62 = scmp.eq.s32.totalorder %s21, 0
      %p63 = por %p61, %p62
      %p64 = scmp.ne.s32.totalorder %s52, %s53
      %p65 = scmp.eq.s32.totalorder %s22, 1
      %p66 = por %p64, %p65
      %p68 = scmp.ne.s32.totalorder %s53, %s67
      %p69 = scmp.eq.s32.totalorder %s22, 0
      %p70 = por %p68, %p69
      %s72 = sadd.s32 %s71, 1
      %p75 = scmp.eq.s32.totalorder %s16, 1
      %p76 = scmp.ne.s32.totalorder %s71, %s73
      %p77 = scmp.eq.s32.totalorder %s16, 0
      %p78 = por %p76, %p77
      %p79 = scmp.ne.s32.totalorder %s71, %s73
      %p80 = scmp.eq.s32.totalorder %s21, 1
      %p81 = por %p79, %p80
      %p82 = scmp.ne.s32.totalorder %s73, %s74
      %p83 = scmp.eq.s32.totalorder %s21, 0
      %p84 = por %p82, %p83
      %p85 = scmp.ne.s32.totalorder %s73, %s74
      %p86 = scmp.eq.s32.totalorder %s22, 1
      %p87 = por %p85, %p86
      %p89 = scmp.ne.s32.totalorder %s74, %s88
      %p90 = scmp.eq.s32.totalorder %s22, 0
      %p91 = por %p89, %p90
      %s92 = ssub.s32 %s16, %s23
      %p93 = scmp.eq.s32.totalorder %s92, 0
      %s95 = sadd.s32 %s94, 1
      %s96 = scalar_select %p93, %s94, %s95
      %p99 = pneg %p93
      %p100 = scmp.eq.s32.totalorder %s16, 1
      %p101 = por %p99, %p100
      %p102 = scmp.ne.s32.totalorder %s94, %s97
      %p103 = scmp.eq.s32.totalorder %s16, 0
      %p104 = por %p102, %p103
      %p105 = scmp.ne.s32.totalorder %s94, %s97
      %p106 = scmp.eq.s32.totalorder %s21, 1
      %p107 = por %p105, %p106
      %p108 = scmp.ne.s32.totalorder %s97, %s98
      %p109 = scmp.eq.s32.totalorder %s21, 0
      %p110 = por %p108, %p109
      %p111 = scmp.ne.s32.totalorder %s97, %s98
      %p112 = scmp.eq.s32.totalorder %s22, 1
      %p113 = por %p111, %p112
      %p115 = scmp.ne.s32.totalorder %s98, %s114
      %p116 = scmp.eq.s32.totalorder %s22, 0
      %p117 = por %p115, %p116
      %p118 = scmp.le.s32.totalorder 1, %s16
      %p119 = scmp.lt.s32.totalorder %s16, 3
      %p120 = pnand %p118, %p119
      %p121 = pneg %p120
      // Predicated region
      $region9: #{tpu_custom_call.1} parent=5 // pred_check
        _
      $region10: #{tpu_custom_call.1} parent=5 // pred_check_branch
        %123 = sbr.rel (%p120) target = $region12
      $region11: #{tpu_custom_call.1} parent=5 // pred_region
        %s124 = ssub.s32 %s16, 1
        // Predicated region
        $region13: #{tpu_custom_call.1} parent=11 // pred_check
          %p125 = pneg %p63
        $region14: #{tpu_custom_call.1} parent=11 // pred_check_branch
          %127 = sbr.rel (%p125) target = $region16
        $region15: #{tpu_custom_call.1} parent=11 // pred_region
          %s129 = ssub.s32 8192, 8192
          %130 = vsyncadd [#allocation6], %s129
          %s131 = sshll.u32 [#allocation5], 4
          %s132 = int_to_ptr.vmem [resolvable:$true] %s131
          %137 = dma.hbm_to_vmem [thread:$0]  %s1, 8192, %s132, [#allocation6], 128, 128, 8
        $region16: #{tpu_custom_call.1} parent=11 // pred_fallthru
          _
        // Predicated region
        $region17: #{tpu_custom_call.1} parent=11 // pred_check
          %p138 = pneg %p84
        $region18: #{tpu_custom_call.1} parent=11 // pred_check_branch
          %140 = sbr.rel (%p138) target = $region20
        $region19: #{tpu_custom_call.1} parent=11 // pred_region
          _
        $region20: #{tpu_custom_call.1} parent=11 // pred_fallthru
          _
      $region12: #{tpu_custom_call.1} parent=5 // pred_fallthru
        _
      %p141 = scmp.lt.s32.totalorder %s16, 2
      // Predicated region
      $region21: #{tpu_custom_call.1} parent=5 // pred_check
        %p142 = pneg %p141
      $region22: #{tpu_custom_call.1} parent=5 // pred_check_branch
        %144 = sbr.rel (%p142) target = $region24
      $region23: #{tpu_custom_call.1} parent=5 // pred_region
        // Predicated region
        $region25: #{tpu_custom_call.1} parent=23 // pred_check
          %p145 = pneg %p36
        $region26: #{tpu_custom_call.1} parent=23 // pred_check_branch
          %147 = sbr.rel (%p145) target = $region28
        $region27: #{tpu_custom_call.1} parent=23 // pred_region
          %s148 = sand.u32 %s26, 1
          %s149 = scalar_lea.sflag [#allocation3], %s148
          %s150 = sand.u32 %s26, 1
          %s151 = smul.addr %s150, 512
          %s152 = scalar_lea.vmem [#allocation2], %s151
          %s153 = smul.u32 16, %s16
          %s155 = ssub.s32 8192, 8192
          %156 = vsyncadd %s149, %s155
          %s157 = smul.addr %s153, 4
          %s158 = smul.addr %s157, 128
          %s159 = scalar_lea.hbm %s0, %s158
          %s160 = sshll.u32 %s152, 4
          %s161 = int_to_ptr.vmem [resolvable:$true] %s160
          %166 = dma.hbm_to_vmem [thread:$0]  %s159, 8192, %s161, %s149, 512, 512, 32
        $region28: #{tpu_custom_call.1} parent=23 // pred_fallthru
          _
      $region24: #{tpu_custom_call.1} parent=5 // pred_fallthru
        _
      %p167 = scmp.le.s32.totalorder 1, %s16
      %p168 = scmp.lt.s32.totalorder %s16, 3
      %p169 = pnand %p167, %p168
      %p170 = pneg %p169
      // Predicated region
      $region29: #{tpu_custom_call.1} parent=5 // pred_check
        _
      $region30: #{tpu_custom_call.1} parent=5 // pred_check_branch
        %172 = sbr.rel (%p169) target = $region32
      $region31: #{tpu_custom_call.1} parent=5 // pred_region
        %s173 = ssub.s32 %s16, 1
        %s174 = sand.u32 %s29, 1
        %s175 = scalar_lea.sflag [#allocation3], %s174
        %s176 = sand.u32 %s29, 1
        %s177 = smul.addr %s176, 512
        %s178 = scalar_lea.vmem [#allocation2], %s177
        // Predicated region
        $region33: #{tpu_custom_call.1} parent=31 // pred_check
          %p179 = pneg %p42
        $region34: #{tpu_custom_call.1} parent=31 // pred_check_branch
          %181 = sbr.rel (%p179) target = $region36
        $region35: #{tpu_custom_call.1} parent=31 // pred_region
          %182 = dma.done %s175, 8192
        $region36: #{tpu_custom_call.1} parent=31 // pred_fallthru
          _
        // Predicated region
        $region37: #{tpu_custom_call.1} parent=31 // pred_check
          %p183 = pneg %p63
        $region38: #{tpu_custom_call.1} parent=31 // pred_check_branch
          %185 = sbr.rel (%p183) target = $region40
        $region39: #{tpu_custom_call.1} parent=31 // pred_region
          %186 = dma.done [#allocation6], 8192
        $region40: #{tpu_custom_call.1} parent=31 // pred_fallthru
          _
        %s187 = sand.u32 %s29, 1
        %s188 = scalar_lea.sflag [#allocation3], %s187
        %s189 = sand.u32 %s29, 1
        %s190 = smul.addr %s189, 512
        %s191 = scalar_lea.vmem [#allocation2], %s190
        %p192 = pneg %p42
        %p193 = pneg %p39
        %p194 = pneg %p63
        %p195 = pneg %p60
        %p196 = pneg %p84
        %p197 = pneg %p81
        %p198 = pneg %p110
        %p199 = pneg %p107
        %s200 = sand.u32 %s97, 1
        %s201 = scalar_lea.sflag [#allocation4], %s200
        %s202 = sand.u32 %s97, 1
        %s203 = smul.addr %s202, 128
        %s204 = scalar_lea.vmem [#allocation7], %s203
        %s205 = smul.u32 16, %s21
        %s206 = smul.u32 16, %s21
        %v207 = vld [vmem:[%s178] sm:$0xff]
        %v208 = vld [vmem:[%s178 + $0x8] sm:$0xff]
        %v209 = vld [vmem:[%s178 + $0x10] sm:$0xff]
        %v210 = vld [vmem:[%s178 + $0x18] sm:$0xff]
        %v211 = vld [vmem:[%s178 + $0x20] sm:$0xff]
        %v212 = vld [vmem:[%s178 + $0x28] sm:$0xff]
        %v213 = vld [vmem:[%s178 + $0x30] sm:$0xff]
        %v214 = vld [vmem:[%s178 + $0x38] sm:$0xff]
        %v215 = vld [vmem:[%s178 + $0x40] sm:$0xff]
        %v216 = vld [vmem:[%s178 + $0x48] sm:$0xff]
        %v217 = vld [vmem:[%s178 + $0x50] sm:$0xff]
        %v218 = vld [vmem:[%s178 + $0x58] sm:$0xff]
        %v219 = vld [vmem:[%s178 + $0x60] sm:$0xff]
        %v220 = vld [vmem:[%s178 + $0x68] sm:$0xff]
        %v221 = vld [vmem:[%s178 + $0x70] sm:$0xff]
        %v222 = vld [vmem:[%s178 + $0x78] sm:$0xff]
        %v223 = vld [vmem:[%s178 + $0x80] sm:$0xff]
        %v224 = vld [vmem:[%s178 + $0x88] sm:$0xff]
        %v225 = vld [vmem:[%s178 + $0x90] sm:$0xff]
        %v226 = vld [vmem:[%s178 + $0x98] sm:$0xff]
        %v227 = vld [vmem:[%s178 + $0xa0] sm:$0xff]
        %v228 = vld [vmem:[%s178 + $0xa8] sm:$0xff]
        %v229 = vld [vmem:[%s178 + $0xb0] sm:$0xff]
        %v230 = vld [vmem:[%s178 + $0xb8] sm:$0xff]
        %v231 = vld [vmem:[%s178 + $0xc0] sm:$0xff]
        %v232 = vld [vmem:[%s178 + $0xc8] sm:$0xff]
        %v233 = vld [vmem:[%s178 + $0xd0] sm:$0xff]
        %v234 = vld [vmem:[%s178 + $0xd8] sm:$0xff]
        %v235 = vld [vmem:[%s178 + $0xe0] sm:$0xff]
        %v236 = vld [vmem:[%s178 + $0xe8] sm:$0xff]
        %v237 = vld [vmem:[%s178 + $0xf0] sm:$0xff]
        %v238 = vld [vmem:[%s178 + $0xf8] sm:$0xff]
        %v239 = vld [vmem:[%s178 + $0x100] sm:$0xff]
        %v240 = vld [vmem:[%s178 + $0x108] sm:$0xff]
        %v241 = vld [vmem:[%s178 + $0x110] sm:$0xff]
        %v242 = vld [vmem:[%s178 + $0x118] sm:$0xff]
        %v243 = vld [vmem:[%s178 + $0x120] sm:$0xff]
        %v244 = vld [vmem:[%s178 + $0x128] sm:$0xff]
        %v245 = vld [vmem:[%s178 + $0x130] sm:$0xff]
        %v246 = vld [vmem:[%s178 + $0x138] sm:$0xff]
        %v247 = vld [vmem:[%s178 + $0x140] sm:$0xff]
        %v248 = vld [vmem:[%s178 + $0x148] sm:$0xff]
        %v249 = vld [vmem:[%s178 + $0x150] sm:$0xff]
        %v250 = vld [vmem:[%s178 + $0x158] sm:$0xff]
        %v251 = vld [vmem:[%s178 + $0x160] sm:$0xff]
        %v252 = vld [vmem:[%s178 + $0x168] sm:$0xff]
        %v253 = vld [vmem:[%s178 + $0x170] sm:$0xff]
        %v254 = vld [vmem:[%s178 + $0x178] sm:$0xff]
        %v255 = vld [vmem:[%s178 + $0x180] sm:$0xff]
        %v256 = vld [vmem:[%s178 + $0x188] sm:$0xff]
        %v257 = vld [vmem:[%s178 + $0x190] sm:$0xff]
        %v258 = vld [vmem:[%s178 + $0x198] sm:$0xff]
        %v259 = vld [vmem:[%s178 + $0x1a0] sm:$0xff]
        %v260 = vld [vmem:[%s178 + $0x1a8] sm:$0xff]
        %v261 = vld [vmem:[%s178 + $0x1b0] sm:$0xff]
        %v262 = vld [vmem:[%s178 + $0x1b8] sm:$0xff]
        %v263 = vld [vmem:[%s178 + $0x1c0] sm:$0xff]
        %v264 = vld [vmem:[%s178 + $0x1c8] sm:$0xff]
        %v265 = vld [vmem:[%s178 + $0x1d0] sm:$0xff]
        %v266 = vld [vmem:[%s178 + $0x1d8] sm:$0xff]
        %v267 = vld [vmem:[%s178 + $0x1e0] sm:$0xff]
        %v268 = vld [vmem:[%s178 + $0x1e8] sm:$0xff]
        %v269 = vld [vmem:[%s178 + $0x1f0] sm:$0xff]
        %v270 = vld [vmem:[%s178 + $0x1f8] sm:$0xff]
        %v271 = vld [vmem:[#allocation5] sm:$0xff]
        %v272 = vld [vmem:[#allocation5 + $0x8] sm:$0xff]
        %v273 = vld [vmem:[#allocation5 + $0x10] sm:$0xff]
        %v274 = vld [vmem:[#allocation5 + $0x18] sm:$0xff]
        %v275 = vld [vmem:[#allocation5 + $0x20] sm:$0xff]
        %v276 = vld [vmem:[#allocation5 + $0x28] sm:$0xff]
        %v277 = vld [vmem:[#allocation5 + $0x30] sm:$0xff]
        %v278 = vld [vmem:[#allocation5 + $0x38] sm:$0xff]
        %v279 = vld [vmem:[#allocation5 + $0x40] sm:$0xff]
        %v280 = vld [vmem:[#allocation5 + $0x48] sm:$0xff]
        %v281 = vld [vmem:[#allocation5 + $0x50] sm:$0xff]
        %v282 = vld [vmem:[#allocation5 + $0x58] sm:$0xff]
        %v283 = vld [vmem:[#allocation5 + $0x60] sm:$0xff]
        %v284 = vld [vmem:[#allocation5 + $0x68] sm:$0xff]
        %v285 = vld [vmem:[#allocation5 + $0x70] sm:$0xff]
        %v286 = vld [vmem:[#allocation5 + $0x78] sm:$0xff]
        %v287 = vld [vmem:[#allocation5 + $0x80] sm:$0xff]
        %v288 = vld [vmem:[#allocation5 + $0x88] sm:$0xff]
        %v289 = vld [vmem:[#allocation5 + $0x90] sm:$0xff]
        %v290 = vld [vmem:[#allocation5 + $0x98] sm:$0xff]
        %v291 = vld [vmem:[#allocation5 + $0xa0] sm:$0xff]
        %v292 = vld [vmem:[#allocation5 + $0xa8] sm:$0xff]
        %v293 = vld [vmem:[#allocation5 + $0xb0] sm:$0xff]
        %v294 = vld [vmem:[#allocation5 + $0xb8] sm:$0xff]
        %v295 = vld [vmem:[#allocation5 + $0xc0] sm:$0xff]
        %v296 = vld [vmem:[#allocation5 + $0xc8] sm:$0xff]
        %v297 = vld [vmem:[#allocation5 + $0xd0] sm:$0xff]
        %v298 = vld [vmem:[#allocation5 + $0xd8] sm:$0xff]
        %v299 = vld [vmem:[#allocation5 + $0xe0] sm:$0xff]
        %v300 = vld [vmem:[#allocation5 + $0xe8] sm:$0xff]
        %v301 = vld [vmem:[#allocation5 + $0xf0] sm:$0xff]
        %v302 = vld [vmem:[#allocation5 + $0xf8] sm:$0xff]
        %v303 = vld [vmem:[#allocation5 + $0x100] sm:$0xff]
        %v304 = vld [vmem:[#allocation5 + $0x108] sm:$0xff]
        %v305 = vld [vmem:[#allocation5 + $0x110] sm:$0xff]
        %v306 = vld [vmem:[#allocation5 + $0x118] sm:$0xff]
        %v307 = vld [vmem:[#allocation5 + $0x120] sm:$0xff]
        %v308 = vld [vmem:[#allocation5 + $0x128] sm:$0xff]
        %v309 = vld [vmem:[#allocation5 + $0x130] sm:$0xff]
        %v310 = vld [vmem:[#allocation5 + $0x138] sm:$0xff]
        %v311 = vld [vmem:[#allocation5 + $0x140] sm:$0xff]
        %v312 = vld [vmem:[#allocation5 + $0x148] sm:$0xff]
        %v313 = vld [vmem:[#allocation5 + $0x150] sm:$0xff]
        %v314 = vld [vmem:[#allocation5 + $0x158] sm:$0xff]
        %v315 = vld [vmem:[#allocation5 + $0x160] sm:$0xff]
        %v316 = vld [vmem:[#allocation5 + $0x168] sm:$0xff]
        %v317 = vld [vmem:[#allocation5 + $0x170] sm:$0xff]
        %v318 = vld [vmem:[#allocation5 + $0x178] sm:$0xff]
        %v319 = vld [vmem:[#allocation5 + $0x180] sm:$0xff]
        %v320 = vld [vmem:[#allocation5 + $0x188] sm:$0xff]
        %v321 = vld [vmem:[#allocation5 + $0x190] sm:$0xff]
        %v322 = vld [vmem:[#allocation5 + $0x198] sm:$0xff]
        %v323 = vld [vmem:[#allocation5 + $0x1a0] sm:$0xff]
        %v324 = vld [vmem:[#allocation5 + $0x1a8] sm:$0xff]
        %v325 = vld [vmem:[#allocation5 + $0x1b0] sm:$0xff]
        %v326 = vld [vmem:[#allocation5 + $0x1b8] sm:$0xff]
        %v327 = vld [vmem:[#allocation5 + $0x1c0] sm:$0xff]
        %v328 = vld [vmem:[#allocation5 + $0x1c8] sm:$0xff]
        %v329 = vld [vmem:[#allocation5 + $0x1d0] sm:$0xff]
        %v330 = vld [vmem:[#allocation5 + $0x1d8] sm:$0xff]
        %v331 = vld [vmem:[#allocation5 + $0x1e0] sm:$0xff]
        %v332 = vld [vmem:[#allocation5 + $0x1e8] sm:$0xff]
        %v333 = vld [vmem:[#allocation5 + $0x1f0] sm:$0xff]
        %v334 = vld [vmem:[#allocation5 + $0x1f8] sm:$0xff]
        %v335 = vld [vmem:[%s2] sm:$0x1]
        %v337 = vlaneseq
        %v338 = vshrl.u32 %v337, 7
        %v339 = vsub.s32 0, %v338
        %v340 = vrot.slane %v335, %v339
        %342 = vmatprep.subr.mxu0 0.0
        %343 = vmatpush1.msra.mxu0 %v286
        %344 = vmatprep.subr.mxu0 0.0
        %345 = vmatpush1.msra.mxu0 %v285
        %346 = vmatprep.subr.mxu0 0.0
        %347 = vmatpush1.msra.mxu0 %v284
        %348 = vmatprep.subr.mxu0 0.0
        %349 = vmatpush1.msra.mxu0 %v283
        %350 = vmatprep.subr.mxu0 0.0
        %351 = vmatpush1.msra.mxu0 %v282
        %352 = vmatprep.subr.mxu0 0.0
        %353 = vmatpush1.msra.mxu0 %v281
        %354 = vmatprep.subr.mxu0 0.0
        %355 = vmatpush1.msra.mxu0 %v280
        %356 = vmatprep.subr.mxu0 0.0
        %357 = vmatpush1.msra.mxu0 %v279
        %358 = vmatprep.subr.mxu0 0.0
        %359 = vmatpush1.msra.mxu0 %v278
        %360 = vmatprep.subr.mxu0 0.0
        %361 = vmatpush1.msra.mxu0 %v277
        %362 = vmatprep.subr.mxu0 0.0
        %363 = vmatpush1.msra.mxu0 %v276
        %364 = vmatprep.subr.mxu0 0.0
        %365 = vmatpush1.msra.mxu0 %v275
        %366 = vmatprep.subr.mxu0 0.0
        %367 = vmatpush1.msra.mxu0 %v274
        %368 = vmatprep.subr.mxu0 0.0
        %369 = vmatpush1.msra.mxu0 %v273
        %370 = vmatprep.subr.mxu0 0.0
        %371 = vmatpush1.msra.mxu0 %v272
        %372 = vmatprep.subr.mxu0 0.0
        %373 = vmatpush1.msra.mxu0 %v271
        %374 = vmatprep.subr.mxu0 0.0
        %375 = vmatpush2.msra.mxu0 %v302
        %376 = vmatprep.subr.mxu0 0.0
        %377 = vmatpush2.msra.mxu0 %v301
        %378 = vmatprep.subr.mxu0 0.0
        %379 = vmatpush2.msra.mxu0 %v300
        %380 = vmatprep.subr.mxu0 0.0
        %381 = vmatpush2.msra.mxu0 %v299
        %382 = vmatprep.subr.mxu0 0.0
        %383 = vmatpush2.msra.mxu0 %v298
        %384 = vmatprep.subr.mxu0 0.0
        %385 = vmatpush2.msra.mxu0 %v297
        %386 = vmatprep.subr.mxu0 0.0
        %387 = vmatpush2.msra.mxu0 %v296
        %388 = vmatprep.subr.mxu0 0.0
        %389 = vmatpush2.msra.mxu0 %v295
        %390 = vmatprep.subr.mxu0 0.0
        %391 = vmatpush2.msra.mxu0 %v294
        %392 = vmatprep.subr.mxu0 0.0
        %393 = vmatpush2.msra.mxu0 %v293
        %394 = vmatprep.subr.mxu0 0.0
        %395 = vmatpush2.msra.mxu0 %v292
        %396 = vmatprep.subr.mxu0 0.0
        %397 = vmatpush2.msra.mxu0 %v291
        %398 = vmatprep.subr.mxu0 0.0
        %399 = vmatpush2.msra.mxu0 %v290
        %400 = vmatprep.subr.mxu0 0.0
        %401 = vmatpush2.msra.mxu0 %v289
        %402 = vmatprep.subr.mxu0 0.0
        %403 = vmatpush2.msra.mxu0 %v288
        %404 = vmatprep.subr.mxu0 0.0
        %405 = vmatpush2.msra.mxu0 %v287
        %406 = vmatprep.mubr.f32.mxu0 %v208
        %407 = vmatmul.mubr.f32.gmra.mxu0 %v207
        %v408 = vpop.f32.mrf.mxu0
        %v409 = vadd.f32 %v340, %v408
        %v410 = vpop.f32.mrf.mxu0
        %411 = vmatprep.mubr.f32.mxu0 %v212
        %412 = vmatmul.mubr.f32.gmra.mxu0 %v211
        %v413 = vpop.f32.mrf.mxu0
        %v414 = vadd.f32 %v340, %v413
        %v415 = vpop.f32.mrf.mxu0
        %416 = vmatprep.mubr.f32.mxu0 %v216
        %417 = vmatmul.mubr.f32.gmra.mxu0 %v215
        %v418 = vpop.f32.mrf.mxu0
        %v419 = vadd.f32 %v340, %v418
        %v420 = vpop.f32.mrf.mxu0
        %421 = vmatprep.mubr.f32.mxu0 %v220
        %422 = vmatmul.mubr.f32.gmra.mxu0 %v219
        %v423 = vpop.f32.mrf.mxu0
        %v424 = vadd.f32 %v340, %v423
        %v425 = vpop.f32.mrf.mxu0
        %426 = vmatprep.mubr.f32.mxu0 %v224
        %427 = vmatmul.mubr.f32.gmra.mxu0 %v223
        %v428 = vpop.f32.mrf.mxu0
        %v429 = vadd.f32 %v340, %v428
        %v430 = vpop.f32.mrf.mxu0
        %431 = vmatprep.mubr.f32.mxu0 %v228
        %432 = vmatmul.mubr.f32.gmra.mxu0 %v227
        %v433 = vpop.f32.mrf.mxu0
        %v434 = vadd.f32 %v340, %v433
        %v435 = vpop.f32.mrf.mxu0
        %436 = vmatprep.mubr.f32.mxu0 %v232
        %437 = vmatmul.mubr.f32.gmra.mxu0 %v231
        %v438 = vpop.f32.mrf.mxu0
        %v439 = vadd.f32 %v340, %v438
        %v440 = vpop.f32.mrf.mxu0
        %441 = vmatprep.mubr.f32.mxu0 %v236
        %442 = vmatmul.mubr.f32.gmra.mxu0 %v235
        %v443 = vpop.f32.mrf.mxu0
        %v444 = vadd.f32 %v340, %v443
        %v445 = vpop.f32.mrf.mxu0
        %446 = vmatprep.mubr.f32.mxu0 %v240
        %447 = vmatmul.mubr.f32.gmra.mxu0 %v239
        %v448 = vpop.f32.mrf.mxu0
        %v449 = vadd.f32 %v340, %v448
        %v450 = vpop.f32.mrf.mxu0
        %451 = vmatprep.mubr.f32.mxu0 %v244
        %452 = vmatmul.mubr.f32.gmra.mxu0 %v243
        %v453 = vpop.f32.mrf.mxu0
        %v454 = vadd.f32 %v340, %v453
        %v455 = vpop.f32.mrf.mxu0
        %456 = vmatprep.mubr.f32.mxu0 %v248
        %457 = vmatmul.mubr.f32.gmra.mxu0 %v247
        %v458 = vpop.f32.mrf.mxu0
        %v459 = vadd.f32 %v340, %v458
        %v460 = vpop.f32.mrf.mxu0
        %461 = vmatprep.mubr.f32.mxu0 %v252
        %462 = vmatmul.mubr.f32.gmra.mxu0 %v251
        %v463 = vpop.f32.mrf.mxu0
        %v464 = vadd.f32 %v340, %v463
        %v465 = vpop.f32.mrf.mxu0
        %466 = vmatprep.mubr.f32.mxu0 %v256
        %467 = vmatmul.mubr.f32.gmra.mxu0 %v255
        %v468 = vpop.f32.mrf.mxu0
        %v469 = vadd.f32 %v340, %v468
        %v470 = vpop.f32.mrf.mxu0
        %471 = vmatprep.mubr.f32.mxu0 %v260
        %472 = vmatmul.mubr.f32.gmra.mxu0 %v259
        %v473 = vpop.f32.mrf.mxu0
        %v474 = vadd.f32 %v340, %v473
        %v475 = vpop.f32.mrf.mxu0
        %476 = vmatprep.mubr.f32.mxu0 %v264
        %477 = vmatmul.mubr.f32.gmra.mxu0 %v263
        %v478 = vpop.f32.mrf.mxu0
        %v479 = vadd.f32 %v340, %v478
        %v480 = vpop.f32.mrf.mxu0
        %481 = vmatprep.mubr.f32.mxu0 %v268
        %482 = vmatmul.mubr.f32.gmra.mxu0 %v267
        %v483 = vpop.f32.mrf.mxu0
        %v484 = vadd.f32 %v340, %v483
        %v485 = vpop.f32.mrf.mxu0
        %486 = vdwg.mxu0
        %487 = vmatprep.subr.mxu0 0.0
        %488 = vmatpush1.msra.mxu0 %v318
        %489 = vmatprep.subr.mxu0 0.0
        %490 = vmatpush1.msra.mxu0 %v317
        %491 = vmatprep.subr.mxu0 0.0
        %492 = vmatpush1.msra.mxu0 %v316
        %493 = vmatprep.subr.mxu0 0.0
        %494 = vmatpush1.msra.mxu0 %v315
        %495 = vmatprep.subr.mxu0 0.0
        %496 = vmatpush1.msra.mxu0 %v314
        %497 = vmatprep.subr.mxu0 0.0
        %498 = vmatpush1.msra.mxu0 %v313
        %499 = vmatprep.subr.mxu0 0.0
        %500 = vmatpush1.msra.mxu0 %v312
        %501 = vmatprep.subr.mxu0 0.0
        %502 = vmatpush1.msra.mxu0 %v311
        %503 = vmatprep.subr.mxu0 0.0
        %504 = vmatpush1.msra.mxu0 %v310
        %505 = vmatprep.subr.mxu0 0.0
        %506 = vmatpush1.msra.mxu0 %v309
        %507 = vmatprep.subr.mxu0 0.0
        %508 = vmatpush1.msra.mxu0 %v308
        %509 = vmatprep.subr.mxu0 0.0
        %510 = vmatpush1.msra.mxu0 %v307
        %511 = vmatprep.subr.mxu0 0.0
        %512 = vmatpush1.msra.mxu0 %v306
        %513 = vmatprep.subr.mxu0 0.0
        %514 = vmatpush1.msra.mxu0 %v305
        %515 = vmatprep.subr.mxu0 0.0
        %516 = vmatpush1.msra.mxu0 %v304
        %517 = vmatprep.subr.mxu0 0.0
        %518 = vmatpush1.msra.mxu0 %v303
        %519 = vmatprep.subr.mxu0 0.0
        %520 = vmatpush2.msra.mxu0 %v334
        %521 = vmatprep.subr.mxu0 0.0
        %522 = vmatpush2.msra.mxu0 %v333
        %523 = vmatprep.subr.mxu0 0.0
        %524 = vmatpush2.msra.mxu0 %v332
        %525 = vmatprep.subr.mxu0 0.0
        %526 = vmatpush2.msra.mxu0 %v331
        %527 = vmatprep.subr.mxu0 0.0
        %528 = vmatpush2.msra.mxu0 %v330
        %529 = vmatprep.subr.mxu0 0.0
        %530 = vmatpush2.msra.mxu0 %v329
        %531 = vmatprep.subr.mxu0 0.0
        %532 = vmatpush2.msra.mxu0 %v328
        %533 = vmatprep.subr.mxu0 0.0
        %534 = vmatpush2.msra.mxu0 %v327
        %535 = vmatprep.subr.mxu0 0.0
        %536 = vmatpush2.msra.mxu0 %v326
        %537 = vmatprep.subr.mxu0 0.0
        %538 = vmatpush2.msra.mxu0 %v325
        %539 = vmatprep.subr.mxu0 0.0
        %540 = vmatpush2.msra.mxu0 %v324
        %541 = vmatprep.subr.mxu0 0.0
        %542 = vmatpush2.msra.mxu0 %v323
        %543 = vmatprep.subr.mxu0 0.0
        %544 = vmatpush2.msra.mxu0 %v322
        %545 = vmatprep.subr.mxu0 0.0
        %546 = vmatpush2.msra.mxu0 %v321
        %547 = vmatprep.subr.mxu0 0.0
        %548 = vmatpush2.msra.mxu0 %v320
        %549 = vmatprep.subr.mxu0 0.0
        %550 = vmatpush2.msra.mxu0 %v319
        %551 = vmatprep.mubr.f32.mxu0 %v210
        %552 = vmatmul.mubr.f32.gmra.mxu0 %v209
        %v553 = vpop.f32.mrf.mxu0
        %v554 = vadd.f32 %v409, %v553
        %v555 = vpop.f32.mrf.mxu0
        %556 = vmatprep.mubr.f32.mxu0 %v214
        %557 = vmatmul.mubr.f32.gmra.mxu0 %v213
        %v558 = vpop.f32.mrf.mxu0
        %v559 = vadd.f32 %v414, %v558
        %v560 = vpop.f32.mrf.mxu0
        %561 = vmatprep.mubr.f32.mxu0 %v218
        %562 = vmatmul.mubr.f32.gmra.mxu0 %v217
        %v563 = vpop.f32.mrf.mxu0
        %v564 = vadd.f32 %v419, %v563
        %v565 = vpop.f32.mrf.mxu0
        %566 = vmatprep.mubr.f32.mxu0 %v222
        %567 = vmatmul.mubr.f32.gmra.mxu0 %v221
        %v568 = vpop.f32.mrf.mxu0
        %v569 = vadd.f32 %v424, %v568
        %v570 = vpop.f32.mrf.mxu0
        %571 = vmatprep.mubr.f32.mxu0 %v226
        %572 = vmatmul.mubr.f32.gmra.mxu0 %v225
        %v573 = vpop.f32.mrf.mxu0
        %v574 = vadd.f32 %v429, %v573
        %v575 = vpop.f32.mrf.mxu0
        %576 = vmatprep.mubr.f32.mxu0 %v230
        %577 = vmatmul.mubr.f32.gmra.mxu0 %v229
        %v578 = vpop.f32.mrf.mxu0
        %v579 = vadd.f32 %v434, %v578
        %v580 = vpop.f32.mrf.mxu0
        %581 = vmatprep.mubr.f32.mxu0 %v234
        %582 = vmatmul.mubr.f32.gmra.mxu0 %v233
        %v583 = vpop.f32.mrf.mxu0
        %v584 = vadd.f32 %v439, %v583
        %v585 = vpop.f32.mrf.mxu0
        %586 = vmatprep.mubr.f32.mxu0 %v238
        %587 = vmatmul.mubr.f32.gmra.mxu0 %v237
        %v588 = vpop.f32.mrf.mxu0
        %v589 = vadd.f32 %v444, %v588
        %v590 = vpop.f32.mrf.mxu0
        %591 = vmatprep.mubr.f32.mxu0 %v242
        %592 = vmatmul.mubr.f32.gmra.mxu0 %v241
        %v593 = vpop.f32.mrf.mxu0
        %v594 = vadd.f32 %v449, %v593
        %v595 = vpop.f32.mrf.mxu0
        %596 = vmatprep.mubr.f32.mxu0 %v246
        %597 = vmatmul.mubr.f32.gmra.mxu0 %v245
        %v598 = vpop.f32.mrf.mxu0
        %v599 = vadd.f32 %v454, %v598
        %v600 = vpop.f32.mrf.mxu0
        %601 = vmatprep.mubr.f32.mxu0 %v250
        %602 = vmatmul.mubr.f32.gmra.mxu0 %v249
        %v603 = vpop.f32.mrf.mxu0
        %v604 = vadd.f32 %v459, %v603
        %v605 = vpop.f32.mrf.mxu0
        %606 = vmatprep.mubr.f32.mxu0 %v254
        %607 = vmatmul.mubr.f32.gmra.mxu0 %v253
        %v608 = vpop.f32.mrf.mxu0
        %v609 = vadd.f32 %v464, %v608
        %v610 = vpop.f32.mrf.mxu0
        %611 = vmatprep.mubr.f32.mxu0 %v258
        %612 = vmatmul.mubr.f32.gmra.mxu0 %v257
        %v613 = vpop.f32.mrf.mxu0
        %v614 = vadd.f32 %v469, %v613
        %v615 = vpop.f32.mrf.mxu0
        %616 = vmatprep.mubr.f32.mxu0 %v262
        %617 = vmatmul.mubr.f32.gmra.mxu0 %v261
        %v618 = vpop.f32.mrf.mxu0
        %v619 = vadd.f32 %v474, %v618
        %v620 = vpop.f32.mrf.mxu0
        %621 = vmatprep.mubr.f32.mxu0 %v266
        %622 = vmatmul.mubr.f32.gmra.mxu0 %v265
        %v623 = vpop.f32.mrf.mxu0
        %v624 = vadd.f32 %v479, %v623
        %v625 = vpop.f32.mrf.mxu0
        %626 = vmatprep.mubr.f32.mxu0 %v270
        %627 = vmatmul.mubr.f32.gmra.mxu0 %v269
        %v628 = vpop.f32.mrf.mxu0
        %v629 = vadd.f32 %v484, %v628
        %v630 = vpop.f32.mrf.mxu0
        %631 = vdwg.mxu0
        %632 = vst [vmem:[%s204] sm:$0xff] %v554
        %633 = vst [vmem:[%s204 + $0x8] sm:$0xff] %v559
        %634 = vst [vmem:[%s204 + $0x10] sm:$0xff] %v564
        %635 = vst [vmem:[%s204 + $0x18] sm:$0xff] %v569
        %636 = vst [vmem:[%s204 + $0x20] sm:$0xff] %v574
        %637 = vst [vmem:[%s204 + $0x28] sm:$0xff] %v579
        %638 = vst [vmem:[%s204 + $0x30] sm:$0xff] %v584
        %639 = vst [vmem:[%s204 + $0x38] sm:$0xff] %v589
        %640 = vst [vmem:[%s204 + $0x40] sm:$0xff] %v594
        %641 = vst [vmem:[%s204 + $0x48] sm:$0xff] %v599
        %642 = vst [vmem:[%s204 + $0x50] sm:$0xff] %v604
        %643 = vst [vmem:[%s204 + $0x58] sm:$0xff] %v609
        %644 = vst [vmem:[%s204 + $0x60] sm:$0xff] %v614
        %645 = vst [vmem:[%s204 + $0x68] sm:$0xff] %v619
        %646 = vst [vmem:[%s204 + $0x70] sm:$0xff] %v624
        %647 = vst [vmem:[%s204 + $0x78] sm:$0xff] %v629
        %s648 = sand.u32 %s97, 1
        %s649 = scalar_lea.sflag [#allocation4], %s648
        %s650 = sand.u32 %s97, 1
        %s651 = smul.addr %s650, 128
        %s652 = scalar_lea.vmem [#allocation7], %s651
        // Predicated region
        $region41: #{tpu_custom_call.1} parent=31 // pred_check
          %p653 = pneg %p107
        $region42: #{tpu_custom_call.1} parent=31 // pred_check_branch
          %655 = sbr.rel (%p653) target = $region44
        $region43: #{tpu_custom_call.1} parent=31 // pred_region
          %s656 = smul.u32 16, %s21
          %s658 = ssub.s32 2048, 2048
          %659 = vsyncadd %s649, %s658
          %s660 = smul.addr %s656, 128
          %s661 = scalar_lea.hbm %s3, %s660
          %s662 = sshll.u32 %s652, 4
          %s663 = int_to_ptr.vmem [resolvable:$true] %s662
          %668 = dma.vmem_to_hbm [thread:$0]  %s663, 2048, %s661, %s649, 128, 128, 8
        $region44: #{tpu_custom_call.1} parent=31 // pred_fallthru
          _
      $region32: #{tpu_custom_call.1} parent=5 // pred_fallthru
        _
      %p669 = scmp.le.s32.totalorder 2, %s16
      // Predicated region
      $region45: #{tpu_custom_call.1} parent=5 // pred_check
        %p670 = pneg %p669
      $region46: #{tpu_custom_call.1} parent=5 // pred_check_branch
        %672 = sbr.rel (%p670) target = $region48
      $region47: #{tpu_custom_call.1} parent=5 // pred_region
        %s673 = ssub.s32 %s16, 2
        // Predicated region
        $region49: #{tpu_custom_call.1} parent=47 // pred_check
          %p674 = pneg %p113
        $region50: #{tpu_custom_call.1} parent=47 // pred_check_branch
          %676 = sbr.rel (%p674) target = $region52
        $region51: #{tpu_custom_call.1} parent=47 // pred_region
          %s677 = sand.u32 %s98, 1
          %s678 = scalar_lea.sflag [#allocation4], %s677
          %s679 = sand.u32 %s98, 1
          %s680 = smul.addr %s679, 128
          %s681 = scalar_lea.vmem [#allocation7], %s680
          %682 = dma.done %s678, 2048
        $region52: #{tpu_custom_call.1} parent=47 // pred_fallthru
          _
      $region48: #{tpu_custom_call.1} parent=5 // pred_fallthru
        _
    $region6: #{tpu_custom_call.1} parent=1 // loop_footer
      %s20 = sadd.s32 1, %s16
    $region7: #{tpu_custom_call.1} parent=1 // loop_footer_branch
      %15 = sbr.rel target = $region3
    $region8: #{tpu_custom_call.1} parent=1 // loop_exit
      _
    %683 = vsyncpa [#allocation3], 1
    %s684 = scalar_lea.sflag [#allocation3], 1
    %685 = vsyncpa %s684, 1
    %686 = vsyncpa [#allocation6], 1
    %687 = vsyncpa [#allocation4], 1
    %s688 = scalar_lea.sflag [#allocation4], 1
    %689 = vsyncpa %s688, 1

</llo_original>
